<compile_context>
chip_gen: v6e
topology: v6e:2x2x1
jax: 0.10.0
libtpu: 0.0.40
codegen_flags: <defaults>
</compile_context>

<pallas_src>
import functools

import jax
import jax.numpy as jnp
from jax.experimental import pallas as pl
from jax.experimental.pallas import tpu as pltpu


def _flat_shift(x, s):
    """y[:, p] = x[:, p + s] if 0 <= p + s < P else 0.   x: (C, P)."""
    if s == 0:
        return x
    c, p = x.shape
    zeros = jnp.zeros((c, abs(s)), x.dtype)
    if s > 0:
        return jnp.concatenate([x[:, s:], zeros], axis=1)
    return jnp.concatenate([zeros, x[:, :p + s]], axis=1)


def _im2col_3x3(x, mask_l, mask_r, W):
    """Build the (9*C, H*W) im2col operand for a 3x3 / stride 1 / pad 1 conv.

    x: (C, H*W) single image, pixels flattened row-major along the lane axis.
    Row block t = kh*3 + kw holds the input shifted by (dy, dx) = (kh-1, kw-1),
    zero padded at the image border.  mask_l / mask_r are (1, H*W) {0,1} masks
    that zero the column wrapping across a row edge for dx = -1 / +1.
    """
    by_dx = {
        -1: _flat_shift(x, -1) * mask_l,
        0: x,
        1: _flat_shift(x, 1) * mask_r,
    }
    taps = []
    for dy in (-1, 0, 1):          # kh-major: matches the (C_out, kh, kw, C_in) weight reshape
        for dx in (-1, 0, 1):
            # A whole-row shift keeps the column masks aligned; _flat_shift's
            # zero fill provides the top/bottom padding rows.
            taps.append(_flat_shift(by_dx[dx], dy * W))
    return jnp.concatenate(taps, axis=0)


def _conv_stats_kernel(x_ref, w_ref, ml_ref, mr_ref, y_ref, s1_ref, s2_ref, *, W):
    """y = conv3x3(x); also emit per-channel sum / sum-of-squares partials."""
    x = x_ref[0].astype(jnp.float32)                         # (C, H*W)
    cols = _im2col_3x3(x, ml_ref[...], mr_ref[...], W)       # (9C, H*W)
    y = jnp.dot(w_ref[...], cols, preferred_element_type=jnp.float32)
    y_ref[0] = y
    s1_ref[0] = jnp.sum(y, axis=1, keepdims=True)
    s2_ref[0] = jnp.sum(y * y, axis=1, keepdims=True)


def _bn_relu_conv_stats_kernel(y1_ref, sc_ref, sh_ref, w_ref, ml_ref, mr_ref,
                               y_ref, s1_ref, s2_ref, *, W):
    """a = relu(y1*scale + shift); y = conv3x3(a); emit BN2 stat partials."""
    a = jnp.maximum(y1_ref[0] * sc_ref[...] + sh_ref[...], 0.0)   # (C, H*W)
    cols = _im2col_3x3(a, ml_ref[...], mr_ref[...], W)
    y = jnp.dot(w_ref[...], cols, preferred_element_type=jnp.float32)
    y_ref[0] = y
    s1_ref[0] = jnp.sum(y, axis=1, keepdims=True)
    s2_ref[0] = jnp.sum(y * y, axis=1, keepdims=True)


def _bn_residual_kernel(x_ref, y2_ref, sc_ref, sh_ref, out_ref):
    """out = x + (y2*scale + shift); y2's HBM buffer is aliased into out."""
    out_ref[0] = (x_ref[0].astype(jnp.float32)
                  + y2_ref[0] * sc_ref[...] + sh_ref[...]).astype(out_ref.dtype)


def _finalize_bn(ssum, ssq, gamma, beta, count, eps):
    """(N,C,1) partial sums -> per-channel (C,1) scale/shift (biased variance)."""
    s1 = jnp.sum(ssum, axis=0)                                 # (C, 1)
    s2 = jnp.sum(ssq, axis=0)                                  # (C, 1)
    mean = s1 / count
    var = jnp.maximum(s2 / count - mean * mean, 0.0)
    scale = gamma.reshape(-1, 1) * jax.lax.rsqrt(var + eps)
    shift = beta.reshape(-1, 1) - mean * scale
    return scale.astype(jnp.float32), shift.astype(jnp.float32)


def residual_block(x, w1, g1, b1, w2, g2, b2, eps=1e-5):
    """x: (N,C,H,W) NCHW; w1/w2: (C,C,3,3) OIHW; g*/b*: (C,)."""
    N, C, H, W = x.shape
    HW = H * W

    xf = x.reshape(N, C, HW)                      # pixels -> lane axis (lane-dense)
    # OIHW -> (C_out, kh, kw, C_in) -> (C_out, 9*C_in): matches im2col row order.
    w1c = jnp.transpose(w1, (0, 2, 3, 1)).reshape(C, 9 * C).astype(jnp.float32)
    w2c = jnp.transpose(w2, (0, 2, 3, 1)).reshape(C, 9 * C).astype(jnp.float32)

    # {0,1} masks for columns that would wrap across a row edge.
    col = jnp.arange(HW, dtype=jnp.int32) % W
    mask_l = (col > 0).astype(jnp.float32).reshape(1, HW)        # dx = -1 valid
    mask_r = (col < W - 1).astype(jnp.float32).reshape(1, HW)    # dx = +1 valid

    act = pl.BlockSpec((1, C, HW), lambda n: (n, 0, 0))
    stat = pl.BlockSpec((1, C, 1), lambda n: (n, 0, 0))

    def full2d(shape):                            # whole (2-D) array every step
        return pl.BlockSpec(shape, lambda n: (0, 0))

    params = pltpu.CompilerParams(dimension_semantics=("parallel",))

    # ---- pass 1: Conv1 + BN1 partial stats ----------------------------------
    y1, s1a, s1b = pl.pallas_call(
        functools.partial(_conv_stats_kernel, W=W),
        grid=(N,),
        in_specs=[act, full2d((C, 9 * C)), full2d((1, HW)), full2d((1, HW))],
        out_specs=(act, stat, stat),
        out_shape=(jax.ShapeDtypeStruct((N, C, HW), jnp.float32),
                   jax.ShapeDtypeStruct((N, C, 1), jnp.float32),
                   jax.ShapeDtypeStruct((N, C, 1), jnp.float32)),
        compiler_params=params,
    )(xf, w1c, mask_l, mask_r)
    scale1, shift1 = _finalize_bn(s1a, s1b, g1, b1, N * HW, eps)

    # ---- pass 2: BN1 affine + ReLU + Conv2 + BN2 partial stats --------------
    # y1 is only consumed here; reuse its HBM buffer for y2 (copy-free alias).
    y2, s2a, s2b = pl.pallas_call(
        functools.partial(_bn_relu_conv_stats_kernel, W=W),
        grid=(N,),
        in_specs=[act, full2d((C, 1)), full2d((C, 1)), full2d((C, 9 * C)),
                  full2d((1, HW)), full2d((1, HW))],
        out_specs=(act, stat, stat),
        out_shape=(jax.ShapeDtypeStruct((N, C, HW), jnp.float32),
                   jax.ShapeDtypeStruct((N, C, 1), jnp.float32),
                   jax.ShapeDtypeStruct((N, C, 1), jnp.float32)),
        input_output_aliases={0: 0},
        compiler_params=params,
    )(y1, scale1, shift1, w2c, mask_l, mask_r)
    scale2, shift2 = _finalize_bn(s2a, s2b, g2, b2, N * HW, eps)

    # ---- pass 3: BN2 affine + residual add ----------------------------------
    # Alias the y2 *intermediate* (operand 1) into the output; aliasing the
    # non-donated input x would make XLA insert a defensive copy.
    alias3 = {1: 0} if x.dtype == jnp.float32 else {}
    out = pl.pallas_call(
        _bn_residual_kernel,
        grid=(N,),
        in_specs=[act, act, full2d((C, 1)), full2d((C, 1))],
        out_specs=act,
        out_shape=jax.ShapeDtypeStruct((N, C, HW), x.dtype),
        input_output_aliases=alias3,
        compiler_params=params,
    )(xf, y2, scale2, shift2)
    return out.reshape(N, C, H, W)


def _reference(x, w1, g1, b1, w2, g2, b2, eps=1e-5):
    """Pure-JAX reference (NCHW), matches the PyTorch module in training mode."""
    def conv(a, w):
        return jax.lax.conv_general_dilated(
            a, w, window_strides=(1, 1), padding="SAME",
            dimension_numbers=("NCHW", "OIHW", "NCHW"),
            precision=jax.lax.Precision.HIGHEST)

    def bn(a, g, b):
        m = jnp.mean(a, axis=(0, 2, 3), keepdims=True)
        v = jnp.mean((a - m) ** 2, axis=(0, 2, 3), keepdims=True)
        return (a - m) * jax.lax.rsqrt(v + eps) * g.reshape(1, -1, 1, 1) \
            + b.reshape(1, -1, 1, 1)

    y = jnp.maximum(bn(conv(x, w1), g1, b1), 0.0)
    return x + bn(conv(y, w2), g2, b2)


if __name__ == "__main__":
    N, C, H, W = 2, 8, 16, 16                      # PyTorch input is (N, C, H, W)

    key = jax.random.PRNGKey(0)
    kx, kw1, kw2, kg1, kb1, kg2, kb2 = jax.random.split(key, 7)
    x = jax.random.normal(kx, (N, C, H, W), jnp.float32)
    w1 = jax.random.normal(kw1, (C, C, 3, 3), jnp.float32) * 0.1
    w2 = jax.random.normal(kw2, (C, C, 3, 3), jnp.float32) * 0.1
    g1 = 1.0 + 0.1 * jax.random.normal(kg1, (C,), jnp.float32)
    b1 = 0.1 * jax.random.normal(kb1, (C,), jnp.float32)
    g2 = 1.0 + 0.1 * jax.random.normal(kg2, (C,), jnp.float32)
    b2 = 0.1 * jax.random.normal(kb2, (C,), jnp.float32)

    ref = _reference(x, w1, g1, b1, w2, g2, b2)

    run = jax.jit(residual_block)
    out = jax.block_until_ready(run(x, w1, g1, b1, w2, g2, b2))

    max_err = float(jnp.max(jnp.abs(out - ref)))
    assert jnp.allclose(out, ref, atol=1e-3, rtol=1e-3), max_err
    print("KERNEL_OK")
</pallas_src>

<mosaic_0001>
module attributes {stable_mosaic.version = 11 : i64} {
  func.func @_conv_stats_kernel(%arg0: i32, %arg1: memref<1x8x256xf32, #tpu.memory_space<vmem>>, %arg2: memref<8x72xf32, #tpu.memory_space<vmem>>, %arg3: memref<1x256xf32, #tpu.memory_space<vmem>>, %arg4: memref<1x256xf32, #tpu.memory_space<vmem>>, %arg5: memref<1x8x256xf32, #tpu.memory_space<vmem>>, %arg6: memref<1x8x1xf32, #tpu.memory_space<vmem>>, %arg7: memref<1x8x1xf32, #tpu.memory_space<vmem>>) attributes {dimension_semantics = [#tpu.dimension_semantics<parallel>], iteration_bounds = array<i64: 2>, scalar_prefetch = 0 : i64, scratch_operands = 0 : i64, tpu.core_type = #tpu.core_type<tc>, window_params = [{transform_indices = @transform_0, window_bounds = array<i64: 1, 8, 256>}, {pipeline_mode = #tpu.pipeline_mode<synchronous>, transform_indices = @transform_1, window_bounds = array<i64: 8, 72>}, {pipeline_mode = #tpu.pipeline_mode<synchronous>, transform_indices = @transform_2, window_bounds = array<i64: 1, 256>}, {pipeline_mode = #tpu.pipeline_mode<synchronous>, transform_indices = @transform_3, window_bounds = array<i64: 1, 256>}, {transform_indices = @transform_4, window_bounds = array<i64: 1, 8, 256>}, {transform_indices = @transform_5, window_bounds = array<i64: 1, 8, 1>}, {transform_indices = @transform_6, window_bounds = array<i64: 1, 8, 1>}]} {
    %c0 = arith.constant 0 : index
    %c0_0 = arith.constant 0 : index
    %c0_1 = arith.constant 0 : index
    %0 = vector.load %arg1[%c0, %c0_0, %c0_1] : memref<1x8x256xf32, #tpu.memory_space<vmem>>, vector<1x8x256xf32>
    %1 = vector.shape_cast %0 : vector<1x8x256xf32> to vector<8x256xf32>
    %c0_2 = arith.constant 0 : index
    %c0_3 = arith.constant 0 : index
    %2 = vector.load %arg3[%c0_2, %c0_3] : memref<1x256xf32, #tpu.memory_space<vmem>>, vector<1x256xf32>
    %c0_4 = arith.constant 0 : index
    %c0_5 = arith.constant 0 : index
    %3 = vector.load %arg4[%c0_4, %c0_5] : memref<1x256xf32, #tpu.memory_space<vmem>>, vector<1x256xf32>
    %cst = arith.constant 0.000000e+00 : f32
    %4 = vector.broadcast %cst : f32 to vector<8x1xf32>
    %5 = vector.extract_strided_slice %1 {offsets = [0, 0], sizes = [8, 255], strides = [1, 1]} : vector<8x256xf32> to vector<8x255xf32>
    %6 = tpu.concatenate %4, %5 in 1 : vector<8x1xf32>, vector<8x255xf32> -> vector<8x256xf32>
    %7 = vector.broadcast %2 : vector<1x256xf32> to vector<8x256xf32>
    %8 = arith.mulf %6, %7 : vector<8x256xf32>
    %cst_6 = arith.constant 0.000000e+00 : f32
    %9 = vector.broadcast %cst_6 : f32 to vector<8x1xf32>
    %10 = vector.extract_strided_slice %1 {offsets = [0, 1], sizes = [8, 255], strides = [1, 1]} : vector<8x256xf32> to vector<8x255xf32>
    %11 = tpu.concatenate %10, %9 in 1 : vector<8x255xf32>, vector<8x1xf32> -> vector<8x256xf32>
    %12 = vector.broadcast %3 : vector<1x256xf32> to vector<8x256xf32>
    %13 = arith.mulf %11, %12 : vector<8x256xf32>
    %cst_7 = arith.constant 0.000000e+00 : f32
    %14 = vector.broadcast %cst_7 : f32 to vector<8x16xf32>
    %15 = vector.extract_strided_slice %8 {offsets = [0, 0], sizes = [8, 240], strides = [1, 1]} : vector<8x256xf32> to vector<8x240xf32>
    %16 = tpu.concatenate %14, %15 in 1 : vector<8x16xf32>, vector<8x240xf32> -> vector<8x256xf32>
    %cst_8 = arith.constant 0.000000e+00 : f32
    %17 = vector.broadcast %cst_8 : f32 to vector<8x16xf32>
    %18 = vector.extract_strided_slice %1 {offsets = [0, 0], sizes = [8, 240], strides = [1, 1]} : vector<8x256xf32> to vector<8x240xf32>
    %19 = tpu.concatenate %17, %18 in 1 : vector<8x16xf32>, vector<8x240xf32> -> vector<8x256xf32>
    %cst_9 = arith.constant 0.000000e+00 : f32
    %20 = vector.broadcast %cst_9 : f32 to vector<8x16xf32>
    %21 = vector.extract_strided_slice %13 {offsets = [0, 0], sizes = [8, 240], strides = [1, 1]} : vector<8x256xf32> to vector<8x240xf32>
    %22 = tpu.concatenate %20, %21 in 1 : vector<8x16xf32>, vector<8x240xf32> -> vector<8x256xf32>
    %cst_10 = arith.constant 0.000000e+00 : f32
    %23 = vector.broadcast %cst_10 : f32 to vector<8x16xf32>
    %24 = vector.extract_strided_slice %8 {offsets = [0, 16], sizes = [8, 240], strides = [1, 1]} : vector<8x256xf32> to vector<8x240xf32>
    %25 = tpu.concatenate %24, %23 in 1 : vector<8x240xf32>, vector<8x16xf32> -> vector<8x256xf32>
    %cst_11 = arith.constant 0.000000e+00 : f32
    %26 = vector.broadcast %cst_11 : f32 to vector<8x16xf32>
    %27 = vector.extract_strided_slice %1 {offsets = [0, 16], sizes = [8, 240], strides = [1, 1]} : vector<8x256xf32> to vector<8x240xf32>
    %28 = tpu.concatenate %27, %26 in 1 : vector<8x240xf32>, vector<8x16xf32> -> vector<8x256xf32>
    %cst_12 = arith.constant 0.000000e+00 : f32
    %29 = vector.broadcast %cst_12 : f32 to vector<8x16xf32>
    %30 = vector.extract_strided_slice %13 {offsets = [0, 16], sizes = [8, 240], strides = [1, 1]} : vector<8x256xf32> to vector<8x240xf32>
    %31 = tpu.concatenate %30, %29 in 1 : vector<8x240xf32>, vector<8x16xf32> -> vector<8x256xf32>
    %32 = tpu.concatenate %16, %19, %22, %8, %1, %13, %25, %28, %31 in 0 : vector<8x256xf32>, vector<8x256xf32>, vector<8x256xf32>, vector<8x256xf32>, vector<8x256xf32>, vector<8x256xf32>, vector<8x256xf32>, vector<8x256xf32>, vector<8x256xf32> -> vector<72x256xf32>
    %c0_13 = arith.constant 0 : index
    %c0_14 = arith.constant 0 : index
    %33 = vector.load %arg2[%c0_13, %c0_14] : memref<8x72xf32, #tpu.memory_space<vmem>>, vector<8x72xf32>
    %cst_15 = arith.constant dense<0.000000e+00> : vector<8x256xf32>
    %34 = tpu.matmul %33, %32, %cst_15 {dimension_numbers = #tpu.dot_dimension_numbers<[1], [0], [0], [1], [0, 0, 1, 1], [], []>} : vector<8x72xf32>, vector<72x256xf32>, vector<8x256xf32> -> vector<8x256xf32>
    %c0_16 = arith.constant 0 : index
    %c0_17 = arith.constant 0 : index
    %c0_18 = arith.constant 0 : index
    %35 = vector.load %arg5[%c0_16, %c0_17, %c0_18] : memref<1x8x256xf32, #tpu.memory_space<vmem>>, vector<1x8x256xf32>
    %36 = vector.shape_cast %35 : vector<1x8x256xf32> to vector<8x256xf32>
    %37 = vector.shape_cast %34 : vector<8x256xf32> to vector<1x8x256xf32>
    tpu.vector_store %arg5[%c0_16, %c0_17, %c0_18], %37 {strides = array<i32>} : memref<1x8x256xf32, #tpu.memory_space<vmem>>, vector<1x8x256xf32>,
    %cst_19 = arith.constant dense<0.000000e+00> : vector<8xf32>
    %38 = vector.multi_reduction <add>, %34, %cst_19 [1] : vector<8x256xf32> to vector<8xf32>
    %39 = vector.shape_cast %38 : vector<8xf32> to vector<8x1xf32>
    %c0_20 = arith.constant 0 : index
    %c0_21 = arith.constant 0 : index
    %c0_22 = arith.constant 0 : index
    %40 = vector.load %arg6[%c0_20, %c0_21, %c0_22] : memref<1x8x1xf32, #tpu.memory_space<vmem>>, vector<1x8x1xf32>
    %41 = vector.shape_cast %40 : vector<1x8x1xf32> to vector<8x1xf32>
    %42 = vector.shape_cast %39 : vector<8x1xf32> to vector<1x8x1xf32>
    tpu.vector_store %arg6[%c0_20, %c0_21, %c0_22], %42 {strides = array<i32>} : memref<1x8x1xf32, #tpu.memory_space<vmem>>, vector<1x8x1xf32>,
    %43 = arith.mulf %34, %34 : vector<8x256xf32>
    %cst_23 = arith.constant dense<0.000000e+00> : vector<8xf32>
    %44 = vector.multi_reduction <add>, %43, %cst_23 [1] : vector<8x256xf32> to vector<8xf32>
    %45 = vector.shape_cast %44 : vector<8xf32> to vector<8x1xf32>
    %c0_24 = arith.constant 0 : index
    %c0_25 = arith.constant 0 : index
    %c0_26 = arith.constant 0 : index
    %46 = vector.load %arg7[%c0_24, %c0_25, %c0_26] : memref<1x8x1xf32, #tpu.memory_space<vmem>>, vector<1x8x1xf32>
    %47 = vector.shape_cast %46 : vector<1x8x1xf32> to vector<8x1xf32>
    %48 = vector.shape_cast %45 : vector<8x1xf32> to vector<1x8x1xf32>
    tpu.vector_store %arg7[%c0_24, %c0_25, %c0_26], %48 {strides = array<i32>} : memref<1x8x1xf32, #tpu.memory_space<vmem>>, vector<1x8x1xf32>,
    return
  }
  func.func @transform_0(%arg0: i32) -> (i32, i32, i32) {
    %c0_i32 = arith.constant 0 : i32
    %c0_i32_0 = arith.constant 0 : i32
    %c0_i32_1 = arith.constant 0 : i32
    return %arg0, %c0_i32, %c0_i32_0 : i32, i32, i32
  }
  func.func @transform_1(%arg0: i32) -> (i32, i32) {
    %c0_i32 = arith.constant 0 : i32
    %c0_i32_0 = arith.constant 0 : i32
    %c0_i32_1 = arith.constant 0 : i32
    return %c0_i32, %c0_i32_0 : i32, i32
  }
  func.func @transform_2(%arg0: i32) -> (i32, i32) {
    %c0_i32 = arith.constant 0 : i32
    %c0_i32_0 = arith.constant 0 : i32
    %c0_i32_1 = arith.constant 0 : i32
    return %c0_i32, %c0_i32_0 : i32, i32
  }
  func.func @transform_3(%arg0: i32) -> (i32, i32) {
    %c0_i32 = arith.constant 0 : i32
    %c0_i32_0 = arith.constant 0 : i32
    %c0_i32_1 = arith.constant 0 : i32
    return %c0_i32, %c0_i32_0 : i32, i32
  }
  func.func @transform_4(%arg0: i32) -> (i32, i32, i32) {
    %c0_i32 = arith.constant 0 : i32
    %c0_i32_0 = arith.constant 0 : i32
    %c0_i32_1 = arith.constant 0 : i32
    return %arg0, %c0_i32, %c0_i32_0 : i32, i32, i32
  }
  func.func @transform_5(%arg0: i32) -> (i32, i32, i32) {
    %c0_i32 = arith.constant 0 : i32
    %c0_i32_0 = arith.constant 0 : i32
    %c0_i32_1 = arith.constant 0 : i32
    return %arg0, %c0_i32, %c0_i32_0 : i32, i32, i32
  }
  func.func @transform_6(%arg0: i32) -> (i32, i32, i32) {
    %c0_i32 = arith.constant 0 : i32
    %c0_i32_0 = arith.constant 0 : i32
    %c0_i32_1 = arith.constant 0 : i32
    return %arg0, %c0_i32, %c0_i32_0 : i32, i32, i32
  }
}

module attributes {stable_mosaic.version = 11 : i64} {
  func.func @_bn_relu_conv_stats_kernel(%arg0: i32, %arg1: memref<1x8x256xf32, #tpu.memory_space<vmem>>, %arg2: memref<8x1xf32, #tpu.memory_space<vmem>>, %arg3: memref<8x1xf32, #tpu.memory_space<vmem>>, %arg4: memref<8x72xf32, #tpu.memory_space<vmem>>, %arg5: memref<1x256xf32, #tpu.memory_space<vmem>>, %arg6: memref<1x256xf32, #tpu.memory_space<vmem>>, %arg7: memref<1x8x256xf32, #tpu.memory_space<vmem>>, %arg8: memref<1x8x1xf32, #tpu.memory_space<vmem>>, %arg9: memref<1x8x1xf32, #tpu.memory_space<vmem>>) attributes {dimension_semantics = [#tpu.dimension_semantics<parallel>], iteration_bounds = array<i64: 2>, scalar_prefetch = 0 : i64, scratch_operands = 0 : i64, tpu.core_type = #tpu.core_type<tc>, window_params = [{transform_indices = @transform_0, window_bounds = array<i64: 1, 8, 256>}, {pipeline_mode = #tpu.pipeline_mode<synchronous>, transform_indices = @transform_1, window_bounds = array<i64: 8, 1>}, {pipeline_mode = #tpu.pipeline_mode<synchronous>, transform_indices = @transform_2, window_bounds = array<i64: 8, 1>}, {pipeline_mode = #tpu.pipeline_mode<synchronous>, transform_indices = @transform_3, window_bounds = array<i64: 8, 72>}, {pipeline_mode = #tpu.pipeline_mode<synchronous>, transform_indices = @transform_4, window_bounds = array<i64: 1, 256>}, {pipeline_mode = #tpu.pipeline_mode<synchronous>, transform_indices = @transform_5, window_bounds = array<i64: 1, 256>}, {transform_indices = @transform_6, window_bounds = array<i64: 1, 8, 256>}, {transform_indices = @transform_7, window_bounds = array<i64: 1, 8, 1>}, {transform_indices = @transform_8, window_bounds = array<i64: 1, 8, 1>}]} {
    %c0 = arith.constant 0 : index
    %c0_0 = arith.constant 0 : index
    %c0_1 = arith.constant 0 : index
    %0 = vector.load %arg1[%c0, %c0_0, %c0_1] : memref<1x8x256xf32, #tpu.memory_space<vmem>>, vector<1x8x256xf32>
    %1 = vector.shape_cast %0 : vector<1x8x256xf32> to vector<8x256xf32>
    %c0_2 = arith.constant 0 : index
    %c0_3 = arith.constant 0 : index
    %2 = vector.load %arg2[%c0_2, %c0_3] : memref<8x1xf32, #tpu.memory_space<vmem>>, vector<8x1xf32>
    %3 = vector.broadcast %2 : vector<8x1xf32> to vector<8x256xf32>
    %4 = arith.mulf %1, %3 : vector<8x256xf32>
    %c0_4 = arith.constant 0 : index
    %c0_5 = arith.constant 0 : index
    %5 = vector.load %arg3[%c0_4, %c0_5] : memref<8x1xf32, #tpu.memory_space<vmem>>, vector<8x1xf32>
    %6 = vector.broadcast %5 : vector<8x1xf32> to vector<8x256xf32>
    %7 = arith.addf %4, %6 : vector<8x256xf32>
    %cst = arith.constant 0.000000e+00 : f32
    %8 = vector.broadcast %cst : f32 to vector<8x256xf32>
    %9 = arith.maximumf %7, %8 : vector<8x256xf32>
    %c0_6 = arith.constant 0 : index
    %c0_7 = arith.constant 0 : index
    %10 = vector.load %arg5[%c0_6, %c0_7] : memref<1x256xf32, #tpu.memory_space<vmem>>, vector<1x256xf32>
    %c0_8 = arith.constant 0 : index
    %c0_9 = arith.constant 0 : index
    %11 = vector.load %arg6[%c0_8, %c0_9] : memref<1x256xf32, #tpu.memory_space<vmem>>, vector<1x256xf32>
    %cst_10 = arith.constant 0.000000e+00 : f32
    %12 = vector.broadcast %cst_10 : f32 to vector<8x1xf32>
    %13 = vector.extract_strided_slice %9 {offsets = [0, 0], sizes = [8, 255], strides = [1, 1]} : vector<8x256xf32> to vector<8x255xf32>
    %14 = tpu.concatenate %12, %13 in 1 : vector<8x1xf32>, vector<8x255xf32> -> vector<8x256xf32>
    %15 = vector.broadcast %10 : vector<1x256xf32> to vector<8x256xf32>
    %16 = arith.mulf %14, %15 : vector<8x256xf32>
    %cst_11 = arith.constant 0.000000e+00 : f32
    %17 = vector.broadcast %cst_11 : f32 to vector<8x1xf32>
    %18 = vector.extract_strided_slice %9 {offsets = [0, 1], sizes = [8, 255], strides = [1, 1]} : vector<8x256xf32> to vector<8x255xf32>
    %19 = tpu.concatenate %18, %17 in 1 : vector<8x255xf32>, vector<8x1xf32> -> vector<8x256xf32>
    %20 = vector.broadcast %11 : vector<1x256xf32> to vector<8x256xf32>
    %21 = arith.mulf %19, %20 : vector<8x256xf32>
    %cst_12 = arith.constant 0.000000e+00 : f32
    %22 = vector.broadcast %cst_12 : f32 to vector<8x16xf32>
    %23 = vector.extract_strided_slice %16 {offsets = [0, 0], sizes = [8, 240], strides = [1, 1]} : vector<8x256xf32> to vector<8x240xf32>
    %24 = tpu.concatenate %22, %23 in 1 : vector<8x16xf32>, vector<8x240xf32> -> vector<8x256xf32>
    %cst_13 = arith.constant 0.000000e+00 : f32
    %25 = vector.broadcast %cst_13 : f32 to vector<8x16xf32>
    %26 = vector.extract_strided_slice %9 {offsets = [0, 0], sizes = [8, 240], strides = [1, 1]} : vector<8x256xf32> to vector<8x240xf32>
    %27 = tpu.concatenate %25, %26 in 1 : vector<8x16xf32>, vector<8x240xf32> -> vector<8x256xf32>
    %cst_14 = arith.constant 0.000000e+00 : f32
    %28 = vector.broadcast %cst_14 : f32 to vector<8x16xf32>
    %29 = vector.extract_strided_slice %21 {offsets = [0, 0], sizes = [8, 240], strides = [1, 1]} : vector<8x256xf32> to vector<8x240xf32>
    %30 = tpu.concatenate %28, %29 in 1 : vector<8x16xf32>, vector<8x240xf32> -> vector<8x256xf32>
    %cst_15 = arith.constant 0.000000e+00 : f32
    %31 = vector.broadcast %cst_15 : f32 to vector<8x16xf32>
    %32 = vector.extract_strided_slice %16 {offsets = [0, 16], sizes = [8, 240], strides = [1, 1]} : vector<8x256xf32> to vector<8x240xf32>
    %33 = tpu.concatenate %32, %31 in 1 : vector<8x240xf32>, vector<8x16xf32> -> vector<8x256xf32>
    %cst_16 = arith.constant 0.000000e+00 : f32
    %34 = vector.broadcast %cst_16 : f32 to vector<8x16xf32>
    %35 = vector.extract_strided_slice %9 {offsets = [0, 16], sizes = [8, 240], strides = [1, 1]} : vector<8x256xf32> to vector<8x240xf32>
    %36 = tpu.concatenate %35, %34 in 1 : vector<8x240xf32>, vector<8x16xf32> -> vector<8x256xf32>
    %cst_17 = arith.constant 0.000000e+00 : f32
    %37 = vector.broadcast %cst_17 : f32 to vector<8x16xf32>
    %38 = vector.extract_strided_slice %21 {offsets = [0, 16], sizes = [8, 240], strides = [1, 1]} : vector<8x256xf32> to vector<8x240xf32>
    %39 = tpu.concatenate %38, %37 in 1 : vector<8x240xf32>, vector<8x16xf32> -> vector<8x256xf32>
    %40 = tpu.concatenate %24, %27, %30, %16, %9, %21, %33, %36, %39 in 0 : vector<8x256xf32>, vector<8x256xf32>, vector<8x256xf32>, vector<8x256xf32>, vector<8x256xf32>, vector<8x256xf32>, vector<8x256xf32>, vector<8x256xf32>, vector<8x256xf32> -> vector<72x256xf32>
    %c0_18 = arith.constant 0 : index
    %c0_19 = arith.constant 0 : index
    %41 = vector.load %arg4[%c0_18, %c0_19] : memref<8x72xf32, #tpu.memory_space<vmem>>, vector<8x72xf32>
    %cst_20 = arith.constant dense<0.000000e+00> : vector<8x256xf32>
    %42 = tpu.matmul %41, %40, %cst_20 {dimension_numbers = #tpu.dot_dimension_numbers<[1], [0], [0], [1], [0, 0, 1, 1], [], []>} : vector<8x72xf32>, vector<72x256xf32>, vector<8x256xf32> -> vector<8x256xf32>
    %c0_21 = arith.constant 0 : index
    %c0_22 = arith.constant 0 : index
    %c0_23 = arith.constant 0 : index
    %43 = vector.load %arg7[%c0_21, %c0_22, %c0_23] : memref<1x8x256xf32, #tpu.memory_space<vmem>>, vector<1x8x256xf32>
    %44 = vector.shape_cast %43 : vector<1x8x256xf32> to vector<8x256xf32>
    %45 = vector.shape_cast %42 : vector<8x256xf32> to vector<1x8x256xf32>
    tpu.vector_store %arg7[%c0_21, %c0_22, %c0_23], %45 {strides = array<i32>} : memref<1x8x256xf32, #tpu.memory_space<vmem>>, vector<1x8x256xf32>,
    %cst_24 = arith.constant dense<0.000000e+00> : vector<8xf32>
    %46 = vector.multi_reduction <add>, %42, %cst_24 [1] : vector<8x256xf32> to vector<8xf32>
    %47 = vector.shape_cast %46 : vector<8xf32> to vector<8x1xf32>
    %c0_25 = arith.constant 0 : index
    %c0_26 = arith.constant 0 : index
    %c0_27 = arith.constant 0 : index
    %48 = vector.load %arg8[%c0_25, %c0_26, %c0_27] : memref<1x8x1xf32, #tpu.memory_space<vmem>>, vector<1x8x1xf32>
    %49 = vector.shape_cast %48 : vector<1x8x1xf32> to vector<8x1xf32>
    %50 = vector.shape_cast %47 : vector<8x1xf32> to vector<1x8x1xf32>
    tpu.vector_store %arg8[%c0_25, %c0_26, %c0_27], %50 {strides = array<i32>} : memref<1x8x1xf32, #tpu.memory_space<vmem>>, vector<1x8x1xf32>,
    %51 = arith.mulf %42, %42 : vector<8x256xf32>
    %cst_28 = arith.constant dense<0.000000e+00> : vector<8xf32>
    %52 = vector.multi_reduction <add>, %51, %cst_28 [1] : vector<8x256xf32> to vector<8xf32>
    %53 = vector.shape_cast %52 : vector<8xf32> to vector<8x1xf32>
    %c0_29 = arith.constant 0 : index
    %c0_30 = arith.constant 0 : index
    %c0_31 = arith.constant 0 : index
    %54 = vector.load %arg9[%c0_29, %c0_30, %c0_31] : memref<1x8x1xf32, #tpu.memory_space<vmem>>, vector<1x8x1xf32>
    %55 = vector.shape_cast %54 : vector<1x8x1xf32> to vector<8x1xf32>
    %56 = vector.shape_cast %53 : vector<8x1xf32> to vector<1x8x1xf32>
    tpu.vector_store %arg9[%c0_29, %c0_30, %c0_31], %56 {strides = array<i32>} : memref<1x8x1xf32, #tpu.memory_space<vmem>>, vector<1x8x1xf32>,
    return
  }
  func.func @transform_0(%arg0: i32) -> (i32, i32, i32) {
    %c0_i32 = arith.constant 0 : i32
    %c0_i32_0 = arith.constant 0 : i32
    %c0_i32_1 = arith.constant 0 : i32
    return %arg0, %c0_i32, %c0_i32_0 : i32, i32, i32
  }
  func.func @transform_1(%arg0: i32) -> (i32, i32) {
    %c0_i32 = arith.constant 0 : i32
    %c0_i32_0 = arith.constant 0 : i32
    %c0_i32_1 = arith.constant 0 : i32
    return %c0_i32, %c0_i32_0 : i32, i32
  }
  func.func @transform_2(%arg0: i32) -> (i32, i32) {
    %c0_i32 = arith.constant 0 : i32
    %c0_i32_0 = arith.constant 0 : i32
    %c0_i32_1 = arith.constant 0 : i32
    return %c0_i32, %c0_i32_0 : i32, i32
  }
  func.func @transform_3(%arg0: i32) -> (i32, i32) {
    %c0_i32 = arith.constant 0 : i32
    %c0_i32_0 = arith.constant 0 : i32
    %c0_i32_1 = arith.constant 0 : i32
    return %c0_i32, %c0_i32_0 : i32, i32
  }
  func.func @transform_4(%arg0: i32) -> (i32, i32) {
    %c0_i32 = arith.constant 0 : i32
    %c0_i32_0 = arith.constant 0 : i32
    %c0_i32_1 = arith.constant 0 : i32
    return %c0_i32, %c0_i32_0 : i32, i32
  }
  func.func @transform_5(%arg0: i32) -> (i32, i32) {
    %c0_i32 = arith.constant 0 : i32
    %c0_i32_0 = arith.constant 0 : i32
    %c0_i32_1 = arith.constant 0 : i32
    return %c0_i32, %c0_i32_0 : i32, i32
  }
  func.func @transform_6(%arg0: i32) -> (i32, i32, i32) {
    %c0_i32 = arith.constant 0 : i32
    %c0_i32_0 = arith.constant 0 : i32
    %c0_i32_1 = arith.constant 0 : i32
    return %arg0, %c0_i32, %c0_i32_0 : i32, i32, i32
  }
  func.func @transform_7(%arg0: i32) -> (i32, i32, i32) {
    %c0_i32 = arith.constant 0 : i32
    %c0_i32_0 = arith.constant 0 : i32
    %c0_i32_1 = arith.constant 0 : i32
    return %arg0, %c0_i32, %c0_i32_0 : i32, i32, i32
  }
  func.func @transform_8(%arg0: i32) -> (i32, i32, i32) {
    %c0_i32 = arith.constant 0 : i32
    %c0_i32_0 = arith.constant 0 : i32
    %c0_i32_1 = arith.constant 0 : i32
    return %arg0, %c0_i32, %c0_i32_0 : i32, i32, i32
  }
}

module attributes {stable_mosaic.version = 11 : i64} {
  func.func @_bn_residual_kernel(%arg0: i32, %arg1: memref<1x8x256xf32, #tpu.memory_space<vmem>>, %arg2: memref<1x8x256xf32, #tpu.memory_space<vmem>>, %arg3: memref<8x1xf32, #tpu.memory_space<vmem>>, %arg4: memref<8x1xf32, #tpu.memory_space<vmem>>, %arg5: memref<1x8x256xf32, #tpu.memory_space<vmem>>) attributes {dimension_semantics = [#tpu.dimension_semantics<parallel>], iteration_bounds = array<i64: 2>, scalar_prefetch = 0 : i64, scratch_operands = 0 : i64, tpu.core_type = #tpu.core_type<tc>, window_params = [{transform_indices = @transform_0, window_bounds = array<i64: 1, 8, 256>}, {transform_indices = @transform_1, window_bounds = array<i64: 1, 8, 256>}, {pipeline_mode = #tpu.pipeline_mode<synchronous>, transform_indices = @transform_2, window_bounds = array<i64: 8, 1>}, {pipeline_mode = #tpu.pipeline_mode<synchronous>, transform_indices = @transform_3, window_bounds = array<i64: 8, 1>}, {transform_indices = @transform_4, window_bounds = array<i64: 1, 8, 256>}]} {
    %c0 = arith.constant 0 : index
    %c0_0 = arith.constant 0 : index
    %c0_1 = arith.constant 0 : index
    %0 = vector.load %arg1[%c0, %c0_0, %c0_1] : memref<1x8x256xf32, #tpu.memory_space<vmem>>, vector<1x8x256xf32>
    %1 = vector.shape_cast %0 : vector<1x8x256xf32> to vector<8x256xf32>
    %c0_2 = arith.constant 0 : index
    %c0_3 = arith.constant 0 : index
    %c0_4 = arith.constant 0 : index
    %2 = vector.load %arg2[%c0_2, %c0_3, %c0_4] : memref<1x8x256xf32, #tpu.memory_space<vmem>>, vector<1x8x256xf32>
    %3 = vector.shape_cast %2 : vector<1x8x256xf32> to vector<8x256xf32>
    %c0_5 = arith.constant 0 : index
    %c0_6 = arith.constant 0 : index
    %4 = vector.load %arg3[%c0_5, %c0_6] : memref<8x1xf32, #tpu.memory_space<vmem>>, vector<8x1xf32>
    %5 = vector.broadcast %4 : vector<8x1xf32> to vector<8x256xf32>
    %6 = arith.mulf %3, %5 : vector<8x256xf32>
    %7 = arith.addf %1, %6 : vector<8x256xf32>
    %c0_7 = arith.constant 0 : index
    %c0_8 = arith.constant 0 : index
    %8 = vector.load %arg4[%c0_7, %c0_8] : memref<8x1xf32, #tpu.memory_space<vmem>>, vector<8x1xf32>
    %9 = vector.broadcast %8 : vector<8x1xf32> to vector<8x256xf32>
    %10 = arith.addf %7, %9 : vector<8x256xf32>
    %c0_9 = arith.constant 0 : index
    %c0_10 = arith.constant 0 : index
    %c0_11 = arith.constant 0 : index
    %11 = vector.load %arg5[%c0_9, %c0_10, %c0_11] : memref<1x8x256xf32, #tpu.memory_space<vmem>>, vector<1x8x256xf32>
    %12 = vector.shape_cast %11 : vector<1x8x256xf32> to vector<8x256xf32>
    %13 = vector.shape_cast %10 : vector<8x256xf32> to vector<1x8x256xf32>
    tpu.vector_store %arg5[%c0_9, %c0_10, %c0_11], %13 {strides = array<i32>} : memref<1x8x256xf32, #tpu.memory_space<vmem>>, vector<1x8x256xf32>,
    return
  }
  func.func @transform_0(%arg0: i32) -> (i32, i32, i32) {
    %c0_i32 = arith.constant 0 : i32
    %c0_i32_0 = arith.constant 0 : i32
    %c0_i32_1 = arith.constant 0 : i32
    return %arg0, %c0_i32, %c0_i32_0 : i32, i32, i32
  }
  func.func @transform_1(%arg0: i32) -> (i32, i32, i32) {
    %c0_i32 = arith.constant 0 : i32
    %c0_i32_0 = arith.constant 0 : i32
    %c0_i32_1 = arith.constant 0 : i32
    return %arg0, %c0_i32, %c0_i32_0 : i32, i32, i32
  }
  func.func @transform_2(%arg0: i32) -> (i32, i32) {
    %c0_i32 = arith.constant 0 : i32
    %c0_i32_0 = arith.constant 0 : i32
    %c0_i32_1 = arith.constant 0 : i32
    return %c0_i32, %c0_i32_0 : i32, i32
  }
  func.func @transform_3(%arg0: i32) -> (i32, i32) {
    %c0_i32 = arith.constant 0 : i32
    %c0_i32_0 = arith.constant 0 : i32
    %c0_i32_1 = arith.constant 0 : i32
    return %c0_i32, %c0_i32_0 : i32, i32
  }
  func.func @transform_4(%arg0: i32) -> (i32, i32, i32) {
    %c0_i32 = arith.constant 0 : i32
    %c0_i32_0 = arith.constant 0 : i32
    %c0_i32_1 = arith.constant 0 : i32
    return %arg0, %c0_i32, %c0_i32_0 : i32, i32, i32
  }
}

</mosaic_0001>

<llo_original>
// kernel: residual_block.3
$region0: #{residual_block.3}
  #allocation0 [shape = 'u32[]', space=smem, size = 0x4, offset = 0x4, fixed_abs, tag = 'smem constant byte address 0x4 - core index']
  #allocation1 [shape = 'u32[144,128]{1,0:T(1,128)}', space=vmem, size = 0x12000, scoped, tag = 'internal scratch']
  %s0 = inlined_call_operand.vmem [shape: f32[2,8,256], index: 0, kind: input, shape index: {}]
  %s1 = inlined_call_operand.vmem [shape: f32[8,72], index: 1, kind: input, shape index: {}]
  %s2 = inlined_call_operand.vmem [shape: f32[1,256], index: 2, kind: input, shape index: {}]
  %s3 = inlined_call_operand.vmem [shape: f32[1,256], index: 3, kind: input, shape index: {}]
  %s4 = inlined_call_operand.vmem [shape: f32[2,8,256], index: 4, kind: output, shape index: {0}]
  %s5 = inlined_call_operand.vmem [shape: f32[2,8,1], index: 5, kind: output, shape index: {1}]
  %s6 = inlined_call_operand.vmem [shape: f32[2,8,1], index: 6, kind: output, shape index: {2}]
  %7 = xla_tuple %s4, %s5, %s6
  %s8 = sld [smem:[#allocation0]]
  $region65: #{residual_block.3} parent=0
    _
  %s10 = ssub.s32 1, %s8
  %s11 = scalar_select 0, %s10, %s8
  loop: start=0, step=1, limit=4
  $region2: #{residual_block.3} parent=0 // loop_pre_header
    _
  $region3: #{residual_block.3} parent=0 // loop_header
    %s13 = sphi 0, %s17
    %p14 = scmp.ge.s32.totalorder %s13, 4
    %s23 = sphi 0, %s25
    %s26 = sphi 0, %s23
    %s27 = sphi 0, %s26
    %s43 = sphi 0, %s27
    %s47 = sphi 0, %s47
    %s49 = sphi 0, %s47
    %s50 = sphi 0, %s49
    %s64 = sphi 0, %s50
    %s68 = sphi 0, %s68
    %s70 = sphi 0, %s68
    %s71 = sphi 0, %s70
    %s85 = sphi 0, %s71
    %s89 = sphi 0, %s89
    %s91 = sphi 0, %s89
    %s92 = sphi 0, %s91
    %s106 = sphi 0, %s92
    %s112 = sphi 0, %s114
    %s115 = sphi 0, %s112
    %s116 = sphi 0, %s115
    %s132 = sphi 0, %s116
    %s138 = sphi 0, %s140
    %s141 = sphi 0, %s138
    %s142 = sphi 0, %s141
    %s158 = sphi 0, %s142
    %s164 = sphi 0, %s166
    %s167 = sphi 0, %s164
    %s168 = sphi 0, %s167
    %s184 = sphi 0, %s168
  $region4: #{residual_block.3} parent=0 // loop_header_branch
    %16 = sbr.rel (%p14) target = $region8
  $region5: #{residual_block.3} parent=0 // loop_body
    %s18 = ssub.s32 %s13, 1
    %s19 = ssub.s32 %s13, 2
    %s20 = sadd.s32 %s13, 1
    %s21 = ssub.s32 %s13, %s20
    %p22 = scmp.eq.s32.totalorder %s21, 0
    %s24 = sadd.s32 %s23, 1
    %s25 = scalar_select %p22, %s23, %s24
    %p28 = pneg %p22
    %p29 = scmp.eq.s32.totalorder %s13, 1
    %p30 = por %p28, %p29
    %p31 = scmp.ne.s32.totalorder %s23, %s26
    %p32 = scmp.eq.s32.totalorder %s13, 0
    %p33 = por %p31, %p32
    %p34 = scmp.ne.s32.totalorder %s23, %s26
    %p35 = scmp.eq.s32.totalorder %s18, 1
    %p36 = por %p34, %p35
    %p37 = scmp.ne.s32.totalorder %s26, %s27
    %p38 = scmp.eq.s32.totalorder %s18, 0
    %p39 = por %p37, %p38
    %p40 = scmp.ne.s32.totalorder %s26, %s27
    %p41 = scmp.eq.s32.totalorder %s19, 1
    %p42 = por %p40, %p41
    %p44 = scmp.ne.s32.totalorder %s27, %s43
    %p45 = scmp.eq.s32.totalorder %s19, 0
    %p46 = por %p44, %p45
    %s48 = sadd.s32 %s47, 1
    %p51 = scmp.eq.s32.totalorder %s13, 1
    %p52 = scmp.ne.s32.totalorder %s47, %s49
    %p53 = scmp.eq.s32.totalorder %s13, 0
    %p54 = por %p52, %p53
    %p55 = scmp.ne.s32.totalorder %s47, %s49
    %p56 = scmp.eq.s32.totalorder %s18, 1
    %p57 = por %p55, %p56
    %p58 = scmp.ne.s32.totalorder %s49, %s50
    %p59 = scmp.eq.s32.totalorder %s18, 0
    %p60 = por %p58, %p59
    %p61 = scmp.ne.s32.totalorder %s49, %s50
    %p62 = scmp.eq.s32.totalorder %s19, 1
    %p63 = por %p61, %p62
    %p65 = scmp.ne.s32.totalorder %s50, %s64
    %p66 = scmp.eq.s32.totalorder %s19, 0
    %p67 = por %p65, %p66
    %s69 = sadd.s32 %s68, 1
    %p72 = scmp.eq.s32.totalorder %s13, 1
    %p73 = scmp.ne.s32.totalorder %s68, %s70
    %p74 = scmp.eq.s32.totalorder %s13, 0
    %p75 = por %p73, %p74
    %p76 = scmp.ne.s32.totalorder %s68, %s70
    %p77 = scmp.eq.s32.totalorder %s18, 1
    %p78 = por %p76, %p77
    %p79 = scmp.ne.s32.totalorder %s70, %s71
    %p80 = scmp.eq.s32.totalorder %s18, 0
    %p81 = por %p79, %p80
    %p82 = scmp.ne.s32.totalorder %s70, %s71
    %p83 = scmp.eq.s32.totalorder %s19, 1
    %p84 = por %p82, %p83
    %p86 = scmp.ne.s32.totalorder %s71, %s85
    %p87 = scmp.eq.s32.totalorder %s19, 0
    %p88 = por %p86, %p87
    %s90 = sadd.s32 %s89, 1
    %p93 = scmp.eq.s32.totalorder %s13, 1
    %p94 = scmp.ne.s32.totalorder %s89, %s91
    %p95 = scmp.eq.s32.totalorder %s13, 0
    %p96 = por %p94, %p95
    %p97 = scmp.ne.s32.totalorder %s89, %s91
    %p98 = scmp.eq.s32.totalorder %s18, 1
    %p99 = por %p97, %p98
    %p100 = scmp.ne.s32.totalorder %s91, %s92
    %p101 = scmp.eq.s32.totalorder %s18, 0
    %p102 = por %p100, %p101
    %p103 = scmp.ne.s32.totalorder %s91, %s92
    %p104 = scmp.eq.s32.totalorder %s19, 1
    %p105 = por %p103, %p104
    %p107 = scmp.ne.s32.totalorder %s92, %s106
    %p108 = scmp.eq.s32.totalorder %s19, 0
    %p109 = por %p107, %p108
    %s110 = ssub.s32 %s13, %s20
    %p111 = scmp.eq.s32.totalorder %s110, 0
    %s113 = sadd.s32 %s112, 1
    %s114 = scalar_select %p111, %s112, %s113
    %p117 = pneg %p111
    %p118 = scmp.eq.s32.totalorder %s13, 1
    %p119 = por %p117, %p118
    %p120 = scmp.ne.s32.totalorder %s112, %s115
    %p121 = scmp.eq.s32.totalorder %s13, 0
    %p122 = por %p120, %p121
    %p123 = scmp.ne.s32.totalorder %s112, %s115
    %p124 = scmp.eq.s32.totalorder %s18, 1
    %p125 = por %p123, %p124
    %p126 = scmp.ne.s32.totalorder %s115, %s116
    %p127 = scmp.eq.s32.totalorder %s18, 0
    %p128 = por %p126, %p127
    %p129 = scmp.ne.s32.totalorder %s115, %s116
    %p130 = scmp.eq.s32.totalorder %s19, 1
    %p131 = por %p129, %p130
    %p133 = scmp.ne.s32.totalorder %s116, %s132
    %p134 = scmp.eq.s32.totalorder %s19, 0
    %p135 = por %p133, %p134
    %s136 = ssub.s32 %s13, %s20
    %p137 = scmp.eq.s32.totalorder %s136, 0
    %s139 = sadd.s32 %s138, 1
    %s140 = scalar_select %p137, %s138, %s139
    %p143 = pneg %p137
    %p144 = scmp.eq.s32.totalorder %s13, 1
    %p145 = por %p143, %p144
    %p146 = scmp.ne.s32.totalorder %s138, %s141
    %p147 = scmp.eq.s32.totalorder %s13, 0
    %p148 = por %p146, %p147
    %p149 = scmp.ne.s32.totalorder %s138, %s141
    %p150 = scmp.eq.s32.totalorder %s18, 1
    %p151 = por %p149, %p150
    %p152 = scmp.ne.s32.totalorder %s141, %s142
    %p153 = scmp.eq.s32.totalorder %s18, 0
    %p154 = por %p152, %p153
    %p155 = scmp.ne.s32.totalorder %s141, %s142
    %p156 = scmp.eq.s32.totalorder %s19, 1
    %p157 = por %p155, %p156
    %p159 = scmp.ne.s32.totalorder %s142, %s158
    %p160 = scmp.eq.s32.totalorder %s19, 0
    %p161 = por %p159, %p160
    %s162 = ssub.s32 %s13, %s20
    %p163 = scmp.eq.s32.totalorder %s162, 0
    %s165 = sadd.s32 %s164, 1
    %s166 = scalar_select %p163, %s164, %s165
    %p169 = pneg %p163
    %p170 = scmp.eq.s32.totalorder %s13, 1
    %p171 = por %p169, %p170
    %p172 = scmp.ne.s32.totalorder %s164, %s167
    %p173 = scmp.eq.s32.totalorder %s13, 0
    %p174 = por %p172, %p173
    %p175 = scmp.ne.s32.totalorder %s164, %s167
    %p176 = scmp.eq.s32.totalorder %s18, 1
    %p177 = por %p175, %p176
    %p178 = scmp.ne.s32.totalorder %s167, %s168
    %p179 = scmp.eq.s32.totalorder %s18, 0
    %p180 = por %p178, %p179
    %p181 = scmp.ne.s32.totalorder %s167, %s168
    %p182 = scmp.eq.s32.totalorder %s19, 1
    %p183 = por %p181, %p182
    %p185 = scmp.ne.s32.totalorder %s168, %s184
    %p186 = scmp.eq.s32.totalorder %s19, 0
    %p187 = por %p185, %p186
    %p188 = scmp.le.s32.totalorder 1, %s13
    %p189 = scmp.lt.s32.totalorder %s13, 3
    %p190 = pnand %p188, %p189
    %p191 = pneg %p190
    // Predicated region
    $region9: #{residual_block.3} parent=5 // pred_check
      _
    $region10: #{residual_block.3} parent=5 // pred_check_branch
      %193 = sbr.rel (%p190) target = $region12
    $region11: #{residual_block.3} parent=5 // pred_region
      %s194 = ssub.s32 %s13, 1
      // Predicated region
      $region13: #{residual_block.3} parent=11 // pred_check
        %p195 = pneg %p60
      $region14: #{residual_block.3} parent=11 // pred_check_branch
        %197 = sbr.rel (%p195) target = $region16
      $region15: #{residual_block.3} parent=11 // pred_region
        _
      $region16: #{residual_block.3} parent=11 // pred_fallthru
        _
      // Predicated region
      $region17: #{residual_block.3} parent=11 // pred_check
        %p198 = pneg %p81
      $region18: #{residual_block.3} parent=11 // pred_check_branch
        %200 = sbr.rel (%p198) target = $region20
      $region19: #{residual_block.3} parent=11 // pred_region
        _
      $region20: #{residual_block.3} parent=11 // pred_fallthru
        _
      // Predicated region
      $region21: #{residual_block.3} parent=11 // pred_check
        %p201 = pneg %p102
      $region22: #{residual_block.3} parent=11 // pred_check_branch
        %203 = sbr.rel (%p201) target = $region24
      $region23: #{residual_block.3} parent=11 // pred_region
        _
      $region24: #{residual_block.3} parent=11 // pred_fallthru
        _
    $region12: #{residual_block.3} parent=5 // pred_fallthru
      _
    %p204 = scmp.lt.s32.totalorder %s13, 2
    // Predicated region
    $region25: #{residual_block.3} parent=5 // pred_check
      %p205 = pneg %p204
    $region26: #{residual_block.3} parent=5 // pred_check_branch
      %207 = sbr.rel (%p205) target = $region28
    $region27: #{residual_block.3} parent=5 // pred_region
      // Predicated region
      $region29: #{residual_block.3} parent=27 // pred_check
        %p208 = pneg %p33
      $region30: #{residual_block.3} parent=27 // pred_check_branch
        %210 = sbr.rel (%p208) target = $region32
      $region31: #{residual_block.3} parent=27 // pred_region
        %p211 = scmp.lt.s32.totalorder %s13, 1
        %s212 = scalar_select %p211, %s13, 1
        %s213 = smul.addr %s212, 2
        %s214 = smul.addr %s213, 8
        %s215 = scalar_lea.vmem %s0, %s214
      $region32: #{residual_block.3} parent=27 // pred_fallthru
        _
    $region28: #{residual_block.3} parent=5 // pred_fallthru
      _
    %p216 = scmp.le.s32.totalorder 1, %s13
    %p217 = scmp.lt.s32.totalorder %s13, 3
    %p218 = pnand %p216, %p217
    %p219 = pneg %p218
    // Predicated region
    $region33: #{residual_block.3} parent=5 // pred_check
      _
    $region34: #{residual_block.3} parent=5 // pred_check_branch
      %221 = sbr.rel (%p218) target = $region36
    $region35: #{residual_block.3} parent=5 // pred_region
      %s222 = ssub.s32 %s13, 1
      %p223 = scmp.lt.s32.totalorder %s18, 1
      %s224 = scalar_select %p223, %s18, 1
      %s225 = smul.addr %s224, 2
      %s226 = smul.addr %s225, 8
      %s227 = scalar_lea.vmem %s0, %s226
      %p228 = pneg %p39
      %p229 = pneg %p36
      %p230 = pneg %p60
      %p231 = pneg %p57
      %p232 = pneg %p81
      %p233 = pneg %p78
      %p234 = pneg %p102
      %p235 = pneg %p99
      %p236 = pneg %p128
      %p237 = pneg %p125
      %p238 = scmp.lt.s32.totalorder %s18, 1
      %s239 = scalar_select %p238, %s18, 1
      %s240 = smul.addr %s239, 2
      %s241 = smul.addr %s240, 8
      %s242 = scalar_lea.vmem %s4, %s241
      %p243 = pneg %p154
      %p244 = pneg %p151
      %p245 = scmp.lt.s32.totalorder %s18, 1
      %s246 = scalar_select %p245, %s18, 1
      %s247 = smul.addr %s246, 8
      %s248 = scalar_lea.vmem %s5, %s247
      %p249 = pneg %p180
      %p250 = pneg %p177
      %p251 = scmp.lt.s32.totalorder %s18, 1
      %s252 = scalar_select %p251, %s18, 1
      %s253 = smul.addr %s252, 8
      %s254 = scalar_lea.vmem %s6, %s253
      %p255 = scmp.lt.s32.totalorder %s18, 1
      %s256 = scalar_select %p255, %s18, 1
      %s257 = smul.addr %s256, 2
      %s258 = smul.addr %s257, 8
      %s259 = scalar_lea.vmem %s0, %s258
      %p260 = scmp.lt.s32.totalorder %s18, 1
      %s261 = scalar_select %p260, %s18, 1
      %s262 = smul.addr %s261, 2
      %s263 = smul.addr %s262, 8
      %s264 = scalar_lea.vmem %s4, %s263
      %p265 = scmp.lt.s32.totalorder %s18, 1
      %s266 = scalar_select %p265, %s18, 1
      %s267 = smul.addr %s266, 8
      %s268 = scalar_lea.vmem %s5, %s267
      %p269 = scmp.lt.s32.totalorder %s18, 1
      %s270 = scalar_select %p269, %s18, 1
      %s271 = smul.addr %s270, 8
      %s272 = scalar_lea.vmem %s6, %s271
      %v273 = vld [vmem:[%s259] sm:$0xff]
      %v274 = vld [vmem:[%s259 + $0x8] sm:$0xff]
      %v275 = vld [vmem:[%s2] sm:$0x3]
      %v276 = vld [vmem:[%s3] sm:$0x3]
      %279 = vrot.lane.b32.xlu0 %v273, 1
      %v280 = vpop.permute.xlu0 %279
      %281 = vrot.lane.b32.xlu0 %v274, 1
      %v282 = vpop.permute.xlu0 %281
      %vm283 = vcmask 7168
      %v284 = vsel %vm283, %v280, %v282
      %v287 = vsel %vm283, 0.0, %v280
      %v289 = vlaneseq
      %v290 = vshrl.u32 %v289, 7
      %v291 = vsub.s32 0, %v290
      %v292 = vrot.slane %v275, %v291
      %v293 = vlaneseq
      %v294 = vshrl.u32 %v293, 7
      %v295 = vsub.s32 1, %v294
      %v296 = vrot.slane %v275, %v295
      %v299 = vmul.f32 %v287, %v292
      %v300 = vmul.f32 %v284, %v296
      %301 = vrot.lane.b32.xlu0 %v273, 127
      %v302 = vpop.permute.xlu0 %301
      %303 = vrot.lane.b32.xlu0 %v274, 127
      %v304 = vpop.permute.xlu0 %303
      %vm305 = vcmask 1039360
      %v306 = vsel %vm305, %v302, %v304
      %v309 = vsel %vm305, %v304, 0.0
      %v311 = vlaneseq
      %v312 = vshrl.u32 %v311, 7
      %v313 = vsub.s32 0, %v312
      %v314 = vrot.slane %v276, %v313
      %v315 = vlaneseq
      %v316 = vshrl.u32 %v315, 7
      %v317 = vsub.s32 1, %v316
      %v318 = vrot.slane %v276, %v317
      %v321 = vmul.f32 %v306, %v314
      %v322 = vmul.f32 %v309, %v318
      %325 = vrot.lane.b32.xlu0 %v299, 16
      %v326 = vpop.permute.xlu0 %325
      %327 = vrot.lane.b32.xlu0 %v300, 16
      %v328 = vpop.permute.xlu0 %327
      %vm329 = vcmask 130048
      %v330 = vsel %vm329, %v326, %v328
      %v333 = vsel %vm329, 0.0, %v326
      %334 = vrot.lane.b32.xlu0 %v273, 16
      %v335 = vpop.permute.xlu0 %334
      %336 = vrot.lane.b32.xlu0 %v274, 16
      %v337 = vpop.permute.xlu0 %336
      %v338 = vsel %vm329, %v335, %v337
      %v341 = vsel %vm329, 0.0, %v335
      %344 = vrot.lane.b32.xlu0 %v321, 16
      %v345 = vpop.permute.xlu0 %344
      %346 = vrot.lane.b32.xlu0 %v322, 16
      %v347 = vpop.permute.xlu0 %346
      %v348 = vsel %vm329, %v345, %v347
      %v351 = vsel %vm329, 0.0, %v345
      %352 = vrot.lane.b32.xlu0 %v299, 112
      %v353 = vpop.permute.xlu0 %352
      %354 = vrot.lane.b32.xlu0 %v300, 112
      %v355 = vpop.permute.xlu0 %354
      %vm356 = vcmask 916480
      %v357 = vsel %vm356, %v353, %v355
      %v360 = vsel %vm356, %v355, 0.0
      %361 = vrot.lane.b32.xlu0 %v273, 112
      %v362 = vpop.permute.xlu0 %361
      %363 = vrot.lane.b32.xlu0 %v274, 112
      %v364 = vpop.permute.xlu0 %363
      %v365 = vsel %vm356, %v362, %v364
      %v368 = vsel %vm356, %v364, 0.0
      %369 = vrot.lane.b32.xlu0 %v321, 112
      %v370 = vpop.permute.xlu0 %369
      %371 = vrot.lane.b32.xlu0 %v322, 112
      %v372 = vpop.permute.xlu0 %371
      %v373 = vsel %vm356, %v370, %v372
      %v376 = vsel %vm356, %v372, 0.0
      %v377 = vld [vmem:[%s1] sm:$0xff]
      %vm378 = vcmask 588800
      %v380 = vsel %vm378, %v377, 0
      %382 = vmatprep.subr.mxu0 0.0
      %383 = vmatpush1.msra.mxu0 0.0
      %384 = vmatprep.subr.mxu0 0.0
      %385 = vmatpush1.msra.mxu0 0.0
      %386 = vmatprep.subr.mxu0 0.0
      %387 = vmatpush1.msra.mxu0 0.0
      %388 = vmatprep.subr.mxu0 0.0
      %389 = vmatpush1.msra.mxu0 0.0
      %390 = vmatprep.subr.mxu0 0.0
      %391 = vmatpush1.msra.mxu0 0.0
      %392 = vmatprep.subr.mxu0 0.0
      %393 = vmatpush1.msra.mxu0 0.0
      %394 = vmatprep.subr.mxu0 0.0
      %395 = vmatpush1.msra.mxu0 0.0
      %396 = vmatprep.subr.mxu0 %v376
      %397 = vmatpush1.msra.mxu0 %v373
      %398 = vmatprep.subr.mxu0 %v368
      %399 = vmatpush1.msra.mxu0 %v365
      %400 = vmatprep.subr.mxu0 %v360
      %401 = vmatpush1.msra.mxu0 %v357
      %402 = vmatprep.subr.mxu0 %v322
      %403 = vmatpush1.msra.mxu0 %v321
      %404 = vmatprep.subr.mxu0 %v274
      %405 = vmatpush1.msra.mxu0 %v273
      %406 = vmatprep.subr.mxu0 %v300
      %407 = vmatpush1.msra.mxu0 %v299
      %408 = vmatprep.subr.mxu0 %v348
      %409 = vmatpush1.msra.mxu0 %v351
      %410 = vmatprep.subr.mxu0 %v338
      %411 = vmatpush1.msra.mxu0 %v341
      %412 = vmatprep.subr.mxu0 %v330
      %413 = vmatpush1.msra.mxu0 %v333
      %414 = vmatprep.subr.mxu0 0.0
      %415 = vmatpush2.msra.mxu0 0.0
      %416 = vmatprep.subr.mxu0 0.0
      %417 = vmatpush2.msra.mxu0 0.0
      %418 = vmatprep.subr.mxu0 0.0
      %419 = vmatpush2.msra.mxu0 0.0
      %420 = vmatprep.subr.mxu0 0.0
      %421 = vmatpush2.msra.mxu0 0.0
      %422 = vmatprep.subr.mxu0 0.0
      %423 = vmatpush2.msra.mxu0 0.0
      %424 = vmatprep.subr.mxu0 0.0
      %425 = vmatpush2.msra.mxu0 0.0
      %426 = vmatprep.subr.mxu0 0.0
      %427 = vmatpush2.msra.mxu0 0.0
      %428 = vmatprep.subr.mxu0 0.0
      %429 = vmatpush2.msra.mxu0 0.0
      %430 = vmatprep.subr.mxu0 0.0
      %431 = vmatpush2.msra.mxu0 0.0
      %432 = vmatprep.subr.mxu0 0.0
      %433 = vmatpush2.msra.mxu0 0.0
      %434 = vmatprep.subr.mxu0 0.0
      %435 = vmatpush2.msra.mxu0 0.0
      %436 = vmatprep.subr.mxu0 0.0
      %437 = vmatpush2.msra.mxu0 0.0
      %438 = vmatprep.subr.mxu0 0.0
      %439 = vmatpush2.msra.mxu0 0.0
      %440 = vmatprep.subr.mxu0 0.0
      %441 = vmatpush2.msra.mxu0 0.0
      %442 = vmatprep.subr.mxu0 0.0
      %443 = vmatpush2.msra.mxu0 0.0
      %444 = vmatprep.subr.mxu0 0.0
      %445 = vmatpush2.msra.mxu0 0.0
      %446 = vmatprep.mubr.f32.mxu0 0.0
      %447 = vmatmul.mubr.f32.gmra.mxu0 %v380
      %v448 = vpop.f32.mrf.mxu0
      %v449 = vadd.f32 0.0, %v448
      %v450 = vpop.f32.mrf.mxu0
      %v451 = vadd.f32 0.0, %v450
      %452 = vdwg.mxu0
      %453 = vst [vmem:[%s264] sm:$0xff] %v449
      %454 = vst [vmem:[%s264 + $0x8] sm:$0xff] %v451
      %v455 = vadd.f32 %v449, %v451
      %456 = vadd.xlane.f32.xlu0 %v455
      %v457 = vpop.xlane.xlu0 %456
      %458 = vst.msk [vmem:[%s268] sm:$0xff] %vm283, %v457
      %v459 = vmul.f32 %v449, %v449
      %v460 = vmul.f32 %v451, %v451
      %v461 = vadd.f32 %v459, %v460
      %462 = vadd.xlane.f32.xlu0 %v461
      %v463 = vpop.xlane.xlu0 %462
      %464 = vst.msk [vmem:[%s272] sm:$0xff] %vm283, %v463
      %p465 = scmp.lt.s32.totalorder %s18, 1
      %s466 = scalar_select %p465, %s18, 1
      %s467 = smul.addr %s466, 2
      %s468 = smul.addr %s467, 8
      %s469 = scalar_lea.vmem %s4, %s468
      %p470 = scmp.lt.s32.totalorder %s18, 1
      %s471 = scalar_select %p470, %s18, 1
      %s472 = smul.addr %s471, 8
      %s473 = scalar_lea.vmem %s5, %s472
      %p474 = scmp.lt.s32.totalorder %s18, 1
      %s475 = scalar_select %p474, %s18, 1
      %s476 = smul.addr %s475, 8
      %s477 = scalar_lea.vmem %s6, %s476
      // Predicated region
      $region37: #{residual_block.3} parent=35 // pred_check
        %p478 = pneg %p125
      $region38: #{residual_block.3} parent=35 // pred_check_branch
        %480 = sbr.rel (%p478) target = $region40
      $region39: #{residual_block.3} parent=35 // pred_region
        _
      $region40: #{residual_block.3} parent=35 // pred_fallthru
        _
      // Predicated region
      $region41: #{residual_block.3} parent=35 // pred_check
        %p481 = pneg %p151
      $region42: #{residual_block.3} parent=35 // pred_check_branch
        %483 = sbr.rel (%p481) target = $region44
      $region43: #{residual_block.3} parent=35 // pred_region
        _
      $region44: #{residual_block.3} parent=35 // pred_fallthru
        _
      // Predicated region
      $region45: #{residual_block.3} parent=35 // pred_check
        %p484 = pneg %p177
      $region46: #{residual_block.3} parent=35 // pred_check_branch
        %486 = sbr.rel (%p484) target = $region48
      $region47: #{residual_block.3} parent=35 // pred_region
        _
      $region48: #{residual_block.3} parent=35 // pred_fallthru
        _
    $region36: #{residual_block.3} parent=5 // pred_fallthru
      _
    %p487 = scmp.le.s32.totalorder 2, %s13
    // Predicated region
    $region49: #{residual_block.3} parent=5 // pred_check
      %p488 = pneg %p487
    $region50: #{residual_block.3} parent=5 // pred_check_branch
      %490 = sbr.rel (%p488) target = $region52
    $region51: #{residual_block.3} parent=5 // pred_region
      %s491 = ssub.s32 %s13, 2
      // Predicated region
      $region53: #{residual_block.3} parent=51 // pred_check
        %p492 = pneg %p131
      $region54: #{residual_block.3} parent=51 // pred_check_branch
        %494 = sbr.rel (%p492) target = $region56
      $region55: #{residual_block.3} parent=51 // pred_region
        %p495 = scmp.lt.s32.totalorder %s19, 1
        %s496 = scalar_select %p495, %s19, 1
        %s497 = smul.addr %s496, 2
        %s498 = smul.addr %s497, 8
        %s499 = scalar_lea.vmem %s4, %s498
      $region56: #{residual_block.3} parent=51 // pred_fallthru
        _
      // Predicated region
      $region57: #{residual_block.3} parent=51 // pred_check
        %p500 = pneg %p157
      $region58: #{residual_block.3} parent=51 // pred_check_branch
        %502 = sbr.rel (%p500) target = $region60
      $region59: #{residual_block.3} parent=51 // pred_region
        %p503 = scmp.lt.s32.totalorder %s19, 1
        %s504 = scalar_select %p503, %s19, 1
        %s505 = smul.addr %s504, 8
        %s506 = scalar_lea.vmem %s5, %s505
      $region60: #{residual_block.3} parent=51 // pred_fallthru
        _
      // Predicated region
      $region61: #{residual_block.3} parent=51 // pred_check
        %p507 = pneg %p183
      $region62: #{residual_block.3} parent=51 // pred_check_branch
        %509 = sbr.rel (%p507) target = $region64
      $region63: #{residual_block.3} parent=51 // pred_region
        %p510 = scmp.lt.s32.totalorder %s19, 1
        %s511 = scalar_select %p510, %s19, 1
        %s512 = smul.addr %s511, 8
        %s513 = scalar_lea.vmem %s6, %s512
      $region64: #{residual_block.3} parent=51 // pred_fallthru
        _
    $region52: #{residual_block.3} parent=5 // pred_fallthru
      _
  $region6: #{residual_block.3} parent=0 // loop_footer
    %s17 = sadd.s32 1, %s13
  $region7: #{residual_block.3} parent=0 // loop_footer_branch
    %12 = sbr.rel target = $region3
  $region8: #{residual_block.3} parent=0 // loop_exit
    _

// kernel: residual_block.4
$region0: #{residual_block.4}
  #allocation0 [shape = 'u32[]', space=smem, size = 0x4, offset = 0x4, fixed_abs, tag = 'smem constant byte address 0x4 - core index']
  #allocation1 [shape = 'u32[144,128]{1,0:T(1,128)}', space=vmem, size = 0x12000, scoped, tag = 'internal scratch']
  %s0 = inlined_call_operand.vmem [shape: f32[2,8,256], index: 0, kind: input, shape index: {}, may-alias: {0,6}]
  %s1 = inlined_call_operand.vmem [shape: f32[8,1], index: 1, kind: input, shape index: {}]
  %s2 = inlined_call_operand.vmem [shape: f32[8,1], index: 2, kind: input, shape index: {}]
  %s3 = inlined_call_operand.vmem [shape: f32[8,72], index: 3, kind: input, shape index: {}]
  %s4 = inlined_call_operand.vmem [shape: f32[1,256], index: 4, kind: input, shape index: {}]
  %s5 = inlined_call_operand.vmem [shape: f32[1,256], index: 5, kind: input, shape index: {}]
  %s6 = inlined_call_operand.vmem [shape: f32[2,8,256], index: 6, kind: output, shape index: {0}, may-alias: {0,6}]
  %s7 = inlined_call_operand.vmem [shape: f32[2,8,1], index: 7, kind: output, shape index: {1}]
  %s8 = inlined_call_operand.vmem [shape: f32[2,8,1], index: 8, kind: output, shape index: {2}]
  %9 = xla_tuple %s6, %s7, %s8
  %s10 = sld [smem:[#allocation0]]
  $region73: #{residual_block.4} parent=0
    _
  %s12 = ssub.s32 1, %s10
  %s13 = scalar_select 0, %s12, %s10
  loop: start=0, step=1, limit=4
  $region2: #{residual_block.4} parent=0 // loop_pre_header
    _
  $region3: #{residual_block.4} parent=0 // loop_header
    %s15 = sphi 0, %s19
    %p16 = scmp.ge.s32.totalorder %s15, 4
    %s25 = sphi 0, %s27
    %s28 = sphi 0, %s25
    %s29 = sphi 0, %s28
    %s45 = sphi 0, %s29
    %s49 = sphi 0, %s49
    %s51 = sphi 0, %s49
    %s52 = sphi 0, %s51
    %s66 = sphi 0, %s52
    %s70 = sphi 0, %s70
    %s72 = sphi 0, %s70
    %s73 = sphi 0, %s72
    %s87 = sphi 0, %s73
    %s91 = sphi 0, %s91
    %s93 = sphi 0, %s91
    %s94 = sphi 0, %s93
    %s108 = sphi 0, %s94
    %s112 = sphi 0, %s112
    %s114 = sphi 0, %s112
    %s115 = sphi 0, %s114
    %s129 = sphi 0, %s115
    %s133 = sphi 0, %s133
    %s135 = sphi 0, %s133
    %s136 = sphi 0, %s135
    %s150 = sphi 0, %s136
    %s156 = sphi 0, %s158
    %s159 = sphi 0, %s156
    %s160 = sphi 0, %s159
    %s176 = sphi 0, %s160
    %s182 = sphi 0, %s184
    %s185 = sphi 0, %s182
    %s186 = sphi 0, %s185
    %s202 = sphi 0, %s186
    %s208 = sphi 0, %s210
    %s211 = sphi 0, %s208
    %s212 = sphi 0, %s211
    %s228 = sphi 0, %s212
  $region4: #{residual_block.4} parent=0 // loop_header_branch
    %18 = sbr.rel (%p16) target = $region8
  $region5: #{residual_block.4} parent=0 // loop_body
    %s20 = ssub.s32 %s15, 1
    %s21 = ssub.s32 %s15, 2
    %s22 = sadd.s32 %s15, 1
    %s23 = ssub.s32 %s15, %s22
    %p24 = scmp.eq.s32.totalorder %s23, 0
    %s26 = sadd.s32 %s25, 1
    %s27 = scalar_select %p24, %s25, %s26
    %p30 = pneg %p24
    %p31 = scmp.eq.s32.totalorder %s15, 1
    %p32 = por %p30, %p31
    %p33 = scmp.ne.s32.totalorder %s25, %s28
    %p34 = scmp.eq.s32.totalorder %s15, 0
    %p35 = por %p33, %p34
    %p36 = scmp.ne.s32.totalorder %s25, %s28
    %p37 = scmp.eq.s32.totalorder %s20, 1
    %p38 = por %p36, %p37
    %p39 = scmp.ne.s32.totalorder %s28, %s29
    %p40 = scmp.eq.s32.totalorder %s20, 0
    %p41 = por %p39, %p40
    %p42 = scmp.ne.s32.totalorder %s28, %s29
    %p43 = scmp.eq.s32.totalorder %s21, 1
    %p44 = por %p42, %p43
    %p46 = scmp.ne.s32.totalorder %s29, %s45
    %p47 = scmp.eq.s32.totalorder %s21, 0
    %p48 = por %p46, %p47
    %s50 = sadd.s32 %s49, 1
    %p53 = scmp.eq.s32.totalorder %s15, 1
    %p54 = scmp.ne.s32.totalorder %s49, %s51
    %p55 = scmp.eq.s32.totalorder %s15, 0
    %p56 = por %p54, %p55
    %p57 = scmp.ne.s32.totalorder %s49, %s51
    %p58 = scmp.eq.s32.totalorder %s20, 1
    %p59 = por %p57, %p58
    %p60 = scmp.ne.s32.totalorder %s51, %s52
    %p61 = scmp.eq.s32.totalorder %s20, 0
    %p62 = por %p60, %p61
    %p63 = scmp.ne.s32.totalorder %s51, %s52
    %p64 = scmp.eq.s32.totalorder %s21, 1
    %p65 = por %p63, %p64
    %p67 = scmp.ne.s32.totalorder %s52, %s66
    %p68 = scmp.eq.s32.totalorder %s21, 0
    %p69 = por %p67, %p68
    %s71 = sadd.s32 %s70, 1
    %p74 = scmp.eq.s32.totalorder %s15, 1
    %p75 = scmp.ne.s32.totalorder %s70, %s72
    %p76 = scmp.eq.s32.totalorder %s15, 0
    %p77 = por %p75, %p76
    %p78 = scmp.ne.s32.totalorder %s70, %s72
    %p79 = scmp.eq.s32.totalorder %s20, 1
    %p80 = por %p78, %p79
    %p81 = scmp.ne.s32.totalorder %s72, %s73
    %p82 = scmp.eq.s32.totalorder %s20, 0
    %p83 = por %p81, %p82
    %p84 = scmp.ne.s32.totalorder %s72, %s73
    %p85 = scmp.eq.s32.totalorder %s21, 1
    %p86 = por %p84, %p85
    %p88 = scmp.ne.s32.totalorder %s73, %s87
    %p89 = scmp.eq.s32.totalorder %s21, 0
    %p90 = por %p88, %p89
    %s92 = sadd.s32 %s91, 1
    %p95 = scmp.eq.s32.totalorder %s15, 1
    %p96 = scmp.ne.s32.totalorder %s91, %s93
    %p97 = scmp.eq.s32.totalorder %s15, 0
    %p98 = por %p96, %p97
    %p99 = scmp.ne.s32.totalorder %s91, %s93
    %p100 = scmp.eq.s32.totalorder %s20, 1
    %p101 = por %p99, %p100
    %p102 = scmp.ne.s32.totalorder %s93, %s94
    %p103 = scmp.eq.s32.totalorder %s20, 0
    %p104 = por %p102, %p103
    %p105 = scmp.ne.s32.totalorder %s93, %s94
    %p106 = scmp.eq.s32.totalorder %s21, 1
    %p107 = por %p105, %p106
    %p109 = scmp.ne.s32.totalorder %s94, %s108
    %p110 = scmp.eq.s32.totalorder %s21, 0
    %p111 = por %p109, %p110
    %s113 = sadd.s32 %s112, 1
    %p116 = scmp.eq.s32.totalorder %s15, 1
    %p117 = scmp.ne.s32.totalorder %s112, %s114
    %p118 = scmp.eq.s32.totalorder %s15, 0
    %p119 = por %p117, %p118
    %p120 = scmp.ne.s32.totalorder %s112, %s114
    %p121 = scmp.eq.s32.totalorder %s20, 1
    %p122 = por %p120, %p121
    %p123 = scmp.ne.s32.totalorder %s114, %s115
    %p124 = scmp.eq.s32.totalorder %s20, 0
    %p125 = por %p123, %p124
    %p126 = scmp.ne.s32.totalorder %s114, %s115
    %p127 = scmp.eq.s32.totalorder %s21, 1
    %p128 = por %p126, %p127
    %p130 = scmp.ne.s32.totalorder %s115, %s129
    %p131 = scmp.eq.s32.totalorder %s21, 0
    %p132 = por %p130, %p131
    %s134 = sadd.s32 %s133, 1
    %p137 = scmp.eq.s32.totalorder %s15, 1
    %p138 = scmp.ne.s32.totalorder %s133, %s135
    %p139 = scmp.eq.s32.totalorder %s15, 0
    %p140 = por %p138, %p139
    %p141 = scmp.ne.s32.totalorder %s133, %s135
    %p142 = scmp.eq.s32.totalorder %s20, 1
    %p143 = por %p141, %p142
    %p144 = scmp.ne.s32.totalorder %s135, %s136
    %p145 = scmp.eq.s32.totalorder %s20, 0
    %p146 = por %p144, %p145
    %p147 = scmp.ne.s32.totalorder %s135, %s136
    %p148 = scmp.eq.s32.totalorder %s21, 1
    %p149 = por %p147, %p148
    %p151 = scmp.ne.s32.totalorder %s136, %s150
    %p152 = scmp.eq.s32.totalorder %s21, 0
    %p153 = por %p151, %p152
    %s154 = ssub.s32 %s15, %s22
    %p155 = scmp.eq.s32.totalorder %s154, 0
    %s157 = sadd.s32 %s156, 1
    %s158 = scalar_select %p155, %s156, %s157
    %p161 = pneg %p155
    %p162 = scmp.eq.s32.totalorder %s15, 1
    %p163 = por %p161, %p162
    %p164 = scmp.ne.s32.totalorder %s156, %s159
    %p165 = scmp.eq.s32.totalorder %s15, 0
    %p166 = por %p164, %p165
    %p167 = scmp.ne.s32.totalorder %s156, %s159
    %p168 = scmp.eq.s32.totalorder %s20, 1
    %p169 = por %p167, %p168
    %p170 = scmp.ne.s32.totalorder %s159, %s160
    %p171 = scmp.eq.s32.totalorder %s20, 0
    %p172 = por %p170, %p171
    %p173 = scmp.ne.s32.totalorder %s159, %s160
    %p174 = scmp.eq.s32.totalorder %s21, 1
    %p175 = por %p173, %p174
    %p177 = scmp.ne.s32.totalorder %s160, %s176
    %p178 = scmp.eq.s32.totalorder %s21, 0
    %p179 = por %p177, %p178
    %s180 = ssub.s32 %s15, %s22
    %p181 = scmp.eq.s32.totalorder %s180, 0
    %s183 = sadd.s32 %s182, 1
    %s184 = scalar_select %p181, %s182, %s183
    %p187 = pneg %p181
    %p188 = scmp.eq.s32.totalorder %s15, 1
    %p189 = por %p187, %p188
    %p190 = scmp.ne.s32.totalorder %s182, %s185
    %p191 = scmp.eq.s32.totalorder %s15, 0
    %p192 = por %p190, %p191
    %p193 = scmp.ne.s32.totalorder %s182, %s185
    %p194 = scmp.eq.s32.totalorder %s20, 1
    %p195 = por %p193, %p194
    %p196 = scmp.ne.s32.totalorder %s185, %s186
    %p197 = scmp.eq.s32.totalorder %s20, 0
    %p198 = por %p196, %p197
    %p199 = scmp.ne.s32.totalorder %s185, %s186
    %p200 = scmp.eq.s32.totalorder %s21, 1
    %p201 = por %p199, %p200
    %p203 = scmp.ne.s32.totalorder %s186, %s202
    %p204 = scmp.eq.s32.totalorder %s21, 0
    %p205 = por %p203, %p204
    %s206 = ssub.s32 %s15, %s22
    %p207 = scmp.eq.s32.totalorder %s206, 0
    %s209 = sadd.s32 %s208, 1
    %s210 = scalar_select %p207, %s208, %s209
    %p213 = pneg %p207
    %p214 = scmp.eq.s32.totalorder %s15, 1
    %p215 = por %p213, %p214
    %p216 = scmp.ne.s32.totalorder %s208, %s211
    %p217 = scmp.eq.s32.totalorder %s15, 0
    %p218 = por %p216, %p217
    %p219 = scmp.ne.s32.totalorder %s208, %s211
    %p220 = scmp.eq.s32.totalorder %s20, 1
    %p221 = por %p219, %p220
    %p222 = scmp.ne.s32.totalorder %s211, %s212
    %p223 = scmp.eq.s32.totalorder %s20, 0
    %p224 = por %p222, %p223
    %p225 = scmp.ne.s32.totalorder %s211, %s212
    %p226 = scmp.eq.s32.totalorder %s21, 1
    %p227 = por %p225, %p226
    %p229 = scmp.ne.s32.totalorder %s212, %s228
    %p230 = scmp.eq.s32.totalorder %s21, 0
    %p231 = por %p229, %p230
    %p232 = scmp.le.s32.totalorder 1, %s15
    %p233 = scmp.lt.s32.totalorder %s15, 3
    %p234 = pnand %p232, %p233
    %p235 = pneg %p234
    // Predicated region
    $region9: #{residual_block.4} parent=5 // pred_check
      _
    $region10: #{residual_block.4} parent=5 // pred_check_branch
      %237 = sbr.rel (%p234) target = $region12
    $region11: #{residual_block.4} parent=5 // pred_region
      %s238 = ssub.s32 %s15, 1
      // Predicated region
      $region13: #{residual_block.4} parent=11 // pred_check
        %p239 = pneg %p62
      $region14: #{residual_block.4} parent=11 // pred_check_branch
        %241 = sbr.rel (%p239) target = $region16
      $region15: #{residual_block.4} parent=11 // pred_region
        _
      $region16: #{residual_block.4} parent=11 // pred_fallthru
        _
      // Predicated region
      $region17: #{residual_block.4} parent=11 // pred_check
        %p242 = pneg %p83
      $region18: #{residual_block.4} parent=11 // pred_check_branch
        %244 = sbr.rel (%p242) target = $region20
      $region19: #{residual_block.4} parent=11 // pred_region
        _
      $region20: #{residual_block.4} parent=11 // pred_fallthru
        _
      // Predicated region
      $region21: #{residual_block.4} parent=11 // pred_check
        %p245 = pneg %p104
      $region22: #{residual_block.4} parent=11 // pred_check_branch
        %247 = sbr.rel (%p245) target = $region24
      $region23: #{residual_block.4} parent=11 // pred_region
        _
      $region24: #{residual_block.4} parent=11 // pred_fallthru
        _
      // Predicated region
      $region25: #{residual_block.4} parent=11 // pred_check
        %p248 = pneg %p125
      $region26: #{residual_block.4} parent=11 // pred_check_branch
        %250 = sbr.rel (%p248) target = $region28
      $region27: #{residual_block.4} parent=11 // pred_region
        _
      $region28: #{residual_block.4} parent=11 // pred_fallthru
        _
      // Predicated region
      $region29: #{residual_block.4} parent=11 // pred_check
        %p251 = pneg %p146
      $region30: #{residual_block.4} parent=11 // pred_check_branch
        %253 = sbr.rel (%p251) target = $region32
      $region31: #{residual_block.4} parent=11 // pred_region
        _
      $region32: #{residual_block.4} parent=11 // pred_fallthru
        _
    $region12: #{residual_block.4} parent=5 // pred_fallthru
      _
    %p254 = scmp.lt.s32.totalorder %s15, 2
    // Predicated region
    $region33: #{residual_block.4} parent=5 // pred_check
      %p255 = pneg %p254
    $region34: #{residual_block.4} parent=5 // pred_check_branch
      %257 = sbr.rel (%p255) target = $region36
    $region35: #{residual_block.4} parent=5 // pred_region
      // Predicated region
      $region37: #{residual_block.4} parent=35 // pred_check
        %p258 = pneg %p35
      $region38: #{residual_block.4} parent=35 // pred_check_branch
        %260 = sbr.rel (%p258) target = $region40
      $region39: #{residual_block.4} parent=35 // pred_region
        %p261 = scmp.lt.s32.totalorder %s15, 1
        %s262 = scalar_select %p261, %s15, 1
        %s263 = smul.addr %s262, 2
        %s264 = smul.addr %s263, 8
        %s265 = scalar_lea.vmem %s0, %s264
      $region40: #{residual_block.4} parent=35 // pred_fallthru
        _
    $region36: #{residual_block.4} parent=5 // pred_fallthru
      _
    %p266 = scmp.le.s32.totalorder 1, %s15
    %p267 = scmp.lt.s32.totalorder %s15, 3
    %p268 = pnand %p266, %p267
    %p269 = pneg %p268
    // Predicated region
    $region41: #{residual_block.4} parent=5 // pred_check
      _
    $region42: #{residual_block.4} parent=5 // pred_check_branch
      %271 = sbr.rel (%p268) target = $region44
    $region43: #{residual_block.4} parent=5 // pred_region
      %s272 = ssub.s32 %s15, 1
      %p273 = scmp.lt.s32.totalorder %s20, 1
      %s274 = scalar_select %p273, %s20, 1
      %s275 = smul.addr %s274, 2
      %s276 = smul.addr %s275, 8
      %s277 = scalar_lea.vmem %s0, %s276
      %p278 = pneg %p41
      %p279 = pneg %p38
      %p280 = pneg %p62
      %p281 = pneg %p59
      %p282 = pneg %p83
      %p283 = pneg %p80
      %p284 = pneg %p104
      %p285 = pneg %p101
      %p286 = pneg %p125
      %p287 = pneg %p122
      %p288 = pneg %p146
      %p289 = pneg %p143
      %p290 = pneg %p172
      %p291 = pneg %p169
      %p292 = scmp.lt.s32.totalorder %s20, 1
      %s293 = scalar_select %p292, %s20, 1
      %s294 = smul.addr %s293, 2
      %s295 = smul.addr %s294, 8
      %s296 = scalar_lea.vmem %s6, %s295
      %p297 = pneg %p198
      %p298 = pneg %p195
      %p299 = scmp.lt.s32.totalorder %s20, 1
      %s300 = scalar_select %p299, %s20, 1
      %s301 = smul.addr %s300, 8
      %s302 = scalar_lea.vmem %s7, %s301
      %p303 = pneg %p224
      %p304 = pneg %p221
      %p305 = scmp.lt.s32.totalorder %s20, 1
      %s306 = scalar_select %p305, %s20, 1
      %s307 = smul.addr %s306, 8
      %s308 = scalar_lea.vmem %s8, %s307
      %p309 = scmp.lt.s32.totalorder %s20, 1
      %s310 = scalar_select %p309, %s20, 1
      %s311 = smul.addr %s310, 2
      %s312 = smul.addr %s311, 8
      %s313 = scalar_lea.vmem %s0, %s312
      %p314 = scmp.lt.s32.totalorder %s20, 1
      %s315 = scalar_select %p314, %s20, 1
      %s316 = smul.addr %s315, 2
      %s317 = smul.addr %s316, 8
      %s318 = scalar_lea.vmem %s6, %s317
      %p319 = scmp.lt.s32.totalorder %s20, 1
      %s320 = scalar_select %p319, %s20, 1
      %s321 = smul.addr %s320, 8
      %s322 = scalar_lea.vmem %s7, %s321
      %p323 = scmp.lt.s32.totalorder %s20, 1
      %s324 = scalar_select %p323, %s20, 1
      %s325 = smul.addr %s324, 8
      %s326 = scalar_lea.vmem %s8, %s325
      %v327 = vld [vmem:[%s313] sm:$0xff]
      %v328 = vld [vmem:[%s313 + $0x8] sm:$0xff]
      %v329 = vld [vmem:[%s1] sm:$0xff]
      %331 = vset.pattern.permute.xlu0 0
      %332 = vperm.xlu0 %331, %v329
      %v333 = vpop.permute.xlu0 %332
      %v335 = vmul.f32 %v327, %v333
      %v336 = vmul.f32 %v328, %v333
      %v337 = vld [vmem:[%s2] sm:$0xff]
      %339 = vset.pattern.permute.xlu0 0
      %340 = vperm.xlu0 %339, %v337
      %v341 = vpop.permute.xlu0 %340
      %v343 = vadd.f32 %v335, %v341
      %v344 = vadd.f32 %v336, %v341
      %v345 = vmax.f32 %v343, 0.0
      %v346 = vmax.f32 %v344, 0.0
      %v347 = vld [vmem:[%s4] sm:$0x3]
      %v348 = vld [vmem:[%s5] sm:$0x3]
      %351 = vrot.lane.b32.xlu0 %v345, 1
      %v352 = vpop.permute.xlu0 %351
      %353 = vrot.lane.b32.xlu0 %v346, 1
      %v354 = vpop.permute.xlu0 %353
      %vm355 = vcmask 7168
      %v356 = vsel %vm355, %v352, %v354
      %v359 = vsel %vm355, 0.0, %v352
      %v361 = vlaneseq
      %v362 = vshrl.u32 %v361, 7
      %v363 = vsub.s32 0, %v362
      %v364 = vrot.slane %v347, %v363
      %v365 = vlaneseq
      %v366 = vshrl.u32 %v365, 7
      %v367 = vsub.s32 1, %v366
      %v368 = vrot.slane %v347, %v367
      %v371 = vmul.f32 %v359, %v364
      %v372 = vmul.f32 %v356, %v368
      %373 = vrot.lane.b32.xlu0 %v345, 127
      %v374 = vpop.permute.xlu0 %373
      %375 = vrot.lane.b32.xlu0 %v346, 127
      %v376 = vpop.permute.xlu0 %375
      %vm377 = vcmask 1039360
      %v378 = vsel %vm377, %v374, %v376
      %v381 = vsel %vm377, %v376, 0.0
      %v383 = vlaneseq
      %v384 = vshrl.u32 %v383, 7
      %v385 = vsub.s32 0, %v384
      %v386 = vrot.slane %v348, %v385
      %v387 = vlaneseq
      %v388 = vshrl.u32 %v387, 7
      %v389 = vsub.s32 1, %v388
      %v390 = vrot.slane %v348, %v389
      %v393 = vmul.f32 %v378, %v386
      %v394 = vmul.f32 %v381, %v390
      %397 = vrot.lane.b32.xlu0 %v371, 16
      %v398 = vpop.permute.xlu0 %397
      %399 = vrot.lane.b32.xlu0 %v372, 16
      %v400 = vpop.permute.xlu0 %399
      %vm401 = vcmask 130048
      %v402 = vsel %vm401, %v398, %v400
      %v405 = vsel %vm401, 0.0, %v398
      %406 = vrot.lane.b32.xlu0 %v345, 16
      %v407 = vpop.permute.xlu0 %406
      %408 = vrot.lane.b32.xlu0 %v346, 16
      %v409 = vpop.permute.xlu0 %408
      %v410 = vsel %vm401, %v407, %v409
      %v413 = vsel %vm401, 0.0, %v407
      %416 = vrot.lane.b32.xlu0 %v393, 16
      %v417 = vpop.permute.xlu0 %416
      %418 = vrot.lane.b32.xlu0 %v394, 16
      %v419 = vpop.permute.xlu0 %418
      %v420 = vsel %vm401, %v417, %v419
      %v423 = vsel %vm401, 0.0, %v417
      %424 = vrot.lane.b32.xlu0 %v371, 112
      %v425 = vpop.permute.xlu0 %424
      %426 = vrot.lane.b32.xlu0 %v372, 112
      %v427 = vpop.permute.xlu0 %426
      %vm428 = vcmask 916480
      %v429 = vsel %vm428, %v425, %v427
      %v432 = vsel %vm428, %v427, 0.0
      %433 = vrot.lane.b32.xlu0 %v345, 112
      %v434 = vpop.permute.xlu0 %433
      %435 = vrot.lane.b32.xlu0 %v346, 112
      %v436 = vpop.permute.xlu0 %435
      %v437 = vsel %vm428, %v434, %v436
      %v440 = vsel %vm428, %v436, 0.0
      %441 = vrot.lane.b32.xlu0 %v393, 112
      %v442 = vpop.permute.xlu0 %441
      %443 = vrot.lane.b32.xlu0 %v394, 112
      %v444 = vpop.permute.xlu0 %443
      %v445 = vsel %vm428, %v442, %v444
      %v448 = vsel %vm428, %v444, 0.0
      %v449 = vld [vmem:[%s3] sm:$0xff]
      %vm450 = vcmask 588800
      %v452 = vsel %vm450, %v449, 0
      %454 = vmatprep.subr.mxu0 0.0
      %455 = vmatpush1.msra.mxu0 0.0
      %456 = vmatprep.subr.mxu0 0.0
      %457 = vmatpush1.msra.mxu0 0.0
      %458 = vmatprep.subr.mxu0 0.0
      %459 = vmatpush1.msra.mxu0 0.0
      %460 = vmatprep.subr.mxu0 0.0
      %461 = vmatpush1.msra.mxu0 0.0
      %462 = vmatprep.subr.mxu0 0.0
      %463 = vmatpush1.msra.mxu0 0.0
      %464 = vmatprep.subr.mxu0 0.0
      %465 = vmatpush1.msra.mxu0 0.0
      %466 = vmatprep.subr.mxu0 0.0
      %467 = vmatpush1.msra.mxu0 0.0
      %468 = vmatprep.subr.mxu0 %v448
      %469 = vmatpush1.msra.mxu0 %v445
      %470 = vmatprep.subr.mxu0 %v440
      %471 = vmatpush1.msra.mxu0 %v437
      %472 = vmatprep.subr.mxu0 %v432
      %473 = vmatpush1.msra.mxu0 %v429
      %474 = vmatprep.subr.mxu0 %v394
      %475 = vmatpush1.msra.mxu0 %v393
      %476 = vmatprep.subr.mxu0 %v346
      %477 = vmatpush1.msra.mxu0 %v345
      %478 = vmatprep.subr.mxu0 %v372
      %479 = vmatpush1.msra.mxu0 %v371
      %480 = vmatprep.subr.mxu0 %v420
      %481 = vmatpush1.msra.mxu0 %v423
      %482 = vmatprep.subr.mxu0 %v410
      %483 = vmatpush1.msra.mxu0 %v413
      %484 = vmatprep.subr.mxu0 %v402
      %485 = vmatpush1.msra.mxu0 %v405
      %486 = vmatprep.subr.mxu0 0.0
      %487 = vmatpush2.msra.mxu0 0.0
      %488 = vmatprep.subr.mxu0 0.0
      %489 = vmatpush2.msra.mxu0 0.0
      %490 = vmatprep.subr.mxu0 0.0
      %491 = vmatpush2.msra.mxu0 0.0
      %492 = vmatprep.subr.mxu0 0.0
      %493 = vmatpush2.msra.mxu0 0.0
      %494 = vmatprep.subr.mxu0 0.0
      %495 = vmatpush2.msra.mxu0 0.0
      %496 = vmatprep.subr.mxu0 0.0
      %497 = vmatpush2.msra.mxu0 0.0
      %498 = vmatprep.subr.mxu0 0.0
      %499 = vmatpush2.msra.mxu0 0.0
      %500 = vmatprep.subr.mxu0 0.0
      %501 = vmatpush2.msra.mxu0 0.0
      %502 = vmatprep.subr.mxu0 0.0
      %503 = vmatpush2.msra.mxu0 0.0
      %504 = vmatprep.subr.mxu0 0.0
      %505 = vmatpush2.msra.mxu0 0.0
      %506 = vmatprep.subr.mxu0 0.0
      %507 = vmatpush2.msra.mxu0 0.0
      %508 = vmatprep.subr.mxu0 0.0
      %509 = vmatpush2.msra.mxu0 0.0
      %510 = vmatprep.subr.mxu0 0.0
      %511 = vmatpush2.msra.mxu0 0.0
      %512 = vmatprep.subr.mxu0 0.0
      %513 = vmatpush2.msra.mxu0 0.0
      %514 = vmatprep.subr.mxu0 0.0
      %515 = vmatpush2.msra.mxu0 0.0
      %516 = vmatprep.subr.mxu0 0.0
      %517 = vmatpush2.msra.mxu0 0.0
      %518 = vmatprep.mubr.f32.mxu0 0.0
      %519 = vmatmul.mubr.f32.gmra.mxu0 %v452
      %v520 = vpop.f32.mrf.mxu0
      %v521 = vadd.f32 0.0, %v520
      %v522 = vpop.f32.mrf.mxu0
      %v523 = vadd.f32 0.0, %v522
      %524 = vdwg.mxu0
      %525 = vst [vmem:[%s318] sm:$0xff] %v521
      %526 = vst [vmem:[%s318 + $0x8] sm:$0xff] %v523
      %v527 = vadd.f32 %v521, %v523
      %528 = vadd.xlane.f32.xlu0 %v527
      %v529 = vpop.xlane.xlu0 %528
      %530 = vst.msk [vmem:[%s322] sm:$0xff] %vm355, %v529
      %v531 = vmul.f32 %v521, %v521
      %v532 = vmul.f32 %v523, %v523
      %v533 = vadd.f32 %v531, %v532
      %534 = vadd.xlane.f32.xlu0 %v533
      %v535 = vpop.xlane.xlu0 %534
      %536 = vst.msk [vmem:[%s326] sm:$0xff] %vm355, %v535
      %p537 = scmp.lt.s32.totalorder %s20, 1
      %s538 = scalar_select %p537, %s20, 1
      %s539 = smul.addr %s538, 2
      %s540 = smul.addr %s539, 8
      %s541 = scalar_lea.vmem %s6, %s540
      %p542 = scmp.lt.s32.totalorder %s20, 1
      %s543 = scalar_select %p542, %s20, 1
      %s544 = smul.addr %s543, 8
      %s545 = scalar_lea.vmem %s7, %s544
      %p546 = scmp.lt.s32.totalorder %s20, 1
      %s547 = scalar_select %p546, %s20, 1
      %s548 = smul.addr %s547, 8
      %s549 = scalar_lea.vmem %s8, %s548
      // Predicated region
      $region45: #{residual_block.4} parent=43 // pred_check
        %p550 = pneg %p169
      $region46: #{residual_block.4} parent=43 // pred_check_branch
        %552 = sbr.rel (%p550) target = $region48
      $region47: #{residual_block.4} parent=43 // pred_region
        _
      $region48: #{residual_block.4} parent=43 // pred_fallthru
        _
      // Predicated region
      $region49: #{residual_block.4} parent=43 // pred_check
        %p553 = pneg %p195
      $region50: #{residual_block.4} parent=43 // pred_check_branch
        %555 = sbr.rel (%p553) target = $region52
      $region51: #{residual_block.4} parent=43 // pred_region
        _
      $region52: #{residual_block.4} parent=43 // pred_fallthru
        _
      // Predicated region
      $region53: #{residual_block.4} parent=43 // pred_check
        %p556 = pneg %p221
      $region54: #{residual_block.4} parent=43 // pred_check_branch
        %558 = sbr.rel (%p556) target = $region56
      $region55: #{residual_block.4} parent=43 // pred_region
        _
      $region56: #{residual_block.4} parent=43 // pred_fallthru
        _
    $region44: #{residual_block.4} parent=5 // pred_fallthru
      _
    %p559 = scmp.le.s32.totalorder 2, %s15
    // Predicated region
    $region57: #{residual_block.4} parent=5 // pred_check
      %p560 = pneg %p559
    $region58: #{residual_block.4} parent=5 // pred_check_branch
      %562 = sbr.rel (%p560) target = $region60
    $region59: #{residual_block.4} parent=5 // pred_region
      %s563 = ssub.s32 %s15, 2
      // Predicated region
      $region61: #{residual_block.4} parent=59 // pred_check
        %p564 = pneg %p175
      $region62: #{residual_block.4} parent=59 // pred_check_branch
        %566 = sbr.rel (%p564) target = $region64
      $region63: #{residual_block.4} parent=59 // pred_region
        %p567 = scmp.lt.s32.totalorder %s21, 1
        %s568 = scalar_select %p567, %s21, 1
        %s569 = smul.addr %s568, 2
        %s570 = smul.addr %s569, 8
        %s571 = scalar_lea.vmem %s6, %s570
      $region64: #{residual_block.4} parent=59 // pred_fallthru
        _
      // Predicated region
      $region65: #{residual_block.4} parent=59 // pred_check
        %p572 = pneg %p201
      $region66: #{residual_block.4} parent=59 // pred_check_branch
        %574 = sbr.rel (%p572) target = $region68
      $region67: #{residual_block.4} parent=59 // pred_region
        %p575 = scmp.lt.s32.totalorder %s21, 1
        %s576 = scalar_select %p575, %s21, 1
        %s577 = smul.addr %s576, 8
        %s578 = scalar_lea.vmem %s7, %s577
      $region68: #{residual_block.4} parent=59 // pred_fallthru
        _
      // Predicated region
      $region69: #{residual_block.4} parent=59 // pred_check
        %p579 = pneg %p227
      $region70: #{residual_block.4} parent=59 // pred_check_branch
        %581 = sbr.rel (%p579) target = $region72
      $region71: #{residual_block.4} parent=59 // pred_region
        %p582 = scmp.lt.s32.totalorder %s21, 1
        %s583 = scalar_select %p582, %s21, 1
        %s584 = smul.addr %s583, 8
        %s585 = scalar_lea.vmem %s8, %s584
      $region72: #{residual_block.4} parent=59 // pred_fallthru
        _
    $region60: #{residual_block.4} parent=5 // pred_fallthru
      _
  $region6: #{residual_block.4} parent=0 // loop_footer
    %s19 = sadd.s32 1, %s15
  $region7: #{residual_block.4} parent=0 // loop_footer_branch
    %14 = sbr.rel target = $region3
  $region8: #{residual_block.4} parent=0 // loop_exit
    _

// kernel: residual_block.5
$region0: #{residual_block.5}
  #allocation0 [shape = 'u32[]', space=smem, size = 0x4, offset = 0x4, fixed_abs, tag = 'smem constant byte address 0x4 - core index']
  #allocation1 [shape = 'u32[144,128]{1,0:T(1,128)}', space=vmem, size = 0x12000, scoped, tag = 'internal scratch']
  %s0 = inlined_call_operand.vmem [shape: f32[2,8,256], index: 0, kind: input, shape index: {}]
  %s1 = inlined_call_operand.vmem [shape: f32[2,8,256], index: 1, kind: input, shape index: {}, may-alias: {1,4}]
  %s2 = inlined_call_operand.vmem [shape: f32[8,1], index: 2, kind: input, shape index: {}]
  %s3 = inlined_call_operand.vmem [shape: f32[8,1], index: 3, kind: input, shape index: {}]
  %s4 = inlined_call_operand.vmem [shape: f32[2,8,256], index: 4, kind: output, shape index: {}, may-alias: {1,4}]
  %s5 = sld [smem:[#allocation0]]
  $region49: #{residual_block.5} parent=0
    _
  %s7 = ssub.s32 1, %s5
  %s8 = scalar_select 0, %s7, %s5
  loop: start=0, step=1, limit=4
  $region2: #{residual_block.5} parent=0 // loop_pre_header
    _
  $region3: #{residual_block.5} parent=0 // loop_header
    %s10 = sphi 0, %s14
    %p11 = scmp.ge.s32.totalorder %s10, 4
    %s20 = sphi 0, %s22
    %s23 = sphi 0, %s20
    %s24 = sphi 0, %s23
    %s40 = sphi 0, %s24
    %s46 = sphi 0, %s48
    %s49 = sphi 0, %s46
    %s50 = sphi 0, %s49
    %s66 = sphi 0, %s50
    %s70 = sphi 0, %s70
    %s72 = sphi 0, %s70
    %s73 = sphi 0, %s72
    %s87 = sphi 0, %s73
    %s91 = sphi 0, %s91
    %s93 = sphi 0, %s91
    %s94 = sphi 0, %s93
    %s108 = sphi 0, %s94
    %s114 = sphi 0, %s116
    %s117 = sphi 0, %s114
    %s118 = sphi 0, %s117
    %s134 = sphi 0, %s118
  $region4: #{residual_block.5} parent=0 // loop_header_branch
    %13 = sbr.rel (%p11) target = $region8
  $region5: #{residual_block.5} parent=0 // loop_body
    %s15 = ssub.s32 %s10, 1
    %s16 = ssub.s32 %s10, 2
    %s17 = sadd.s32 %s10, 1
    %s18 = ssub.s32 %s10, %s17
    %p19 = scmp.eq.s32.totalorder %s18, 0
    %s21 = sadd.s32 %s20, 1
    %s22 = scalar_select %p19, %s20, %s21
    %p25 = pneg %p19
    %p26 = scmp.eq.s32.totalorder %s10, 1
    %p27 = por %p25, %p26
    %p28 = scmp.ne.s32.totalorder %s20, %s23
    %p29 = scmp.eq.s32.totalorder %s10, 0
    %p30 = por %p28, %p29
    %p31 = scmp.ne.s32.totalorder %s20, %s23
    %p32 = scmp.eq.s32.totalorder %s15, 1
    %p33 = por %p31, %p32
    %p34 = scmp.ne.s32.totalorder %s23, %s24
    %p35 = scmp.eq.s32.totalorder %s15, 0
    %p36 = por %p34, %p35
    %p37 = scmp.ne.s32.totalorder %s23, %s24
    %p38 = scmp.eq.s32.totalorder %s16, 1
    %p39 = por %p37, %p38
    %p41 = scmp.ne.s32.totalorder %s24, %s40
    %p42 = scmp.eq.s32.totalorder %s16, 0
    %p43 = por %p41, %p42
    %s44 = ssub.s32 %s10, %s17
    %p45 = scmp.eq.s32.totalorder %s44, 0
    %s47 = sadd.s32 %s46, 1
    %s48 = scalar_select %p45, %s46, %s47
    %p51 = pneg %p45
    %p52 = scmp.eq.s32.totalorder %s10, 1
    %p53 = por %p51, %p52
    %p54 = scmp.ne.s32.totalorder %s46, %s49
    %p55 = scmp.eq.s32.totalorder %s10, 0
    %p56 = por %p54, %p55
    %p57 = scmp.ne.s32.totalorder %s46, %s49
    %p58 = scmp.eq.s32.totalorder %s15, 1
    %p59 = por %p57, %p58
    %p60 = scmp.ne.s32.totalorder %s49, %s50
    %p61 = scmp.eq.s32.totalorder %s15, 0
    %p62 = por %p60, %p61
    %p63 = scmp.ne.s32.totalorder %s49, %s50
    %p64 = scmp.eq.s32.totalorder %s16, 1
    %p65 = por %p63, %p64
    %p67 = scmp.ne.s32.totalorder %s50, %s66
    %p68 = scmp.eq.s32.totalorder %s16, 0
    %p69 = por %p67, %p68
    %s71 = sadd.s32 %s70, 1
    %p74 = scmp.eq.s32.totalorder %s10, 1
    %p75 = scmp.ne.s32.totalorder %s70, %s72
    %p76 = scmp.eq.s32.totalorder %s10, 0
    %p77 = por %p75, %p76
    %p78 = scmp.ne.s32.totalorder %s70, %s72
    %p79 = scmp.eq.s32.totalorder %s15, 1
    %p80 = por %p78, %p79
    %p81 = scmp.ne.s32.totalorder %s72, %s73
    %p82 = scmp.eq.s32.totalorder %s15, 0
    %p83 = por %p81, %p82
    %p84 = scmp.ne.s32.totalorder %s72, %s73
    %p85 = scmp.eq.s32.totalorder %s16, 1
    %p86 = por %p84, %p85
    %p88 = scmp.ne.s32.totalorder %s73, %s87
    %p89 = scmp.eq.s32.totalorder %s16, 0
    %p90 = por %p88, %p89
    %s92 = sadd.s32 %s91, 1
    %p95 = scmp.eq.s32.totalorder %s10, 1
    %p96 = scmp.ne.s32.totalorder %s91, %s93
    %p97 = scmp.eq.s32.totalorder %s10, 0
    %p98 = por %p96, %p97
    %p99 = scmp.ne.s32.totalorder %s91, %s93
    %p100 = scmp.eq.s32.totalorder %s15, 1
    %p101 = por %p99, %p100
    %p102 = scmp.ne.s32.totalorder %s93, %s94
    %p103 = scmp.eq.s32.totalorder %s15, 0
    %p104 = por %p102, %p103
    %p105 = scmp.ne.s32.totalorder %s93, %s94
    %p106 = scmp.eq.s32.totalorder %s16, 1
    %p107 = por %p105, %p106
    %p109 = scmp.ne.s32.totalorder %s94, %s108
    %p110 = scmp.eq.s32.totalorder %s16, 0
    %p111 = por %p109, %p110
    %s112 = ssub.s32 %s10, %s17
    %p113 = scmp.eq.s32.totalorder %s112, 0
    %s115 = sadd.s32 %s114, 1
    %s116 = scalar_select %p113, %s114, %s115
    %p119 = pneg %p113
    %p120 = scmp.eq.s32.totalorder %s10, 1
    %p121 = por %p119, %p120
    %p122 = scmp.ne.s32.totalorder %s114, %s117
    %p123 = scmp.eq.s32.totalorder %s10, 0
    %p124 = por %p122, %p123
    %p125 = scmp.ne.s32.totalorder %s114, %s117
    %p126 = scmp.eq.s32.totalorder %s15, 1
    %p127 = por %p125, %p126
    %p128 = scmp.ne.s32.totalorder %s117, %s118
    %p129 = scmp.eq.s32.totalorder %s15, 0
    %p130 = por %p128, %p129
    %p131 = scmp.ne.s32.totalorder %s117, %s118
    %p132 = scmp.eq.s32.totalorder %s16, 1
    %p133 = por %p131, %p132
    %p135 = scmp.ne.s32.totalorder %s118, %s134
    %p136 = scmp.eq.s32.totalorder %s16, 0
    %p137 = por %p135, %p136
    %p138 = scmp.le.s32.totalorder 1, %s10
    %p139 = scmp.lt.s32.totalorder %s10, 3
    %p140 = pnand %p138, %p139
    %p141 = pneg %p140
    // Predicated region
    $region9: #{residual_block.5} parent=5 // pred_check
      _
    $region10: #{residual_block.5} parent=5 // pred_check_branch
      %143 = sbr.rel (%p140) target = $region12
    $region11: #{residual_block.5} parent=5 // pred_region
      %s144 = ssub.s32 %s10, 1
      // Predicated region
      $region13: #{residual_block.5} parent=11 // pred_check
        %p145 = pneg %p83
      $region14: #{residual_block.5} parent=11 // pred_check_branch
        %147 = sbr.rel (%p145) target = $region16
      $region15: #{residual_block.5} parent=11 // pred_region
        _
      $region16: #{residual_block.5} parent=11 // pred_fallthru
        _
      // Predicated region
      $region17: #{residual_block.5} parent=11 // pred_check
        %p148 = pneg %p104
      $region18: #{residual_block.5} parent=11 // pred_check_branch
        %150 = sbr.rel (%p148) target = $region20
      $region19: #{residual_block.5} parent=11 // pred_region
        _
      $region20: #{residual_block.5} parent=11 // pred_fallthru
        _
    $region12: #{residual_block.5} parent=5 // pred_fallthru
      _
    %p151 = scmp.lt.s32.totalorder %s10, 2
    // Predicated region
    $region21: #{residual_block.5} parent=5 // pred_check
      %p152 = pneg %p151
    $region22: #{residual_block.5} parent=5 // pred_check_branch
      %154 = sbr.rel (%p152) target = $region24
    $region23: #{residual_block.5} parent=5 // pred_region
      // Predicated region
      $region25: #{residual_block.5} parent=23 // pred_check
        %p155 = pneg %p30
      $region26: #{residual_block.5} parent=23 // pred_check_branch
        %157 = sbr.rel (%p155) target = $region28
      $region27: #{residual_block.5} parent=23 // pred_region
        %p158 = scmp.lt.s32.totalorder %s10, 1
        %s159 = scalar_select %p158, %s10, 1
        %s160 = smul.addr %s159, 2
        %s161 = smul.addr %s160, 8
        %s162 = scalar_lea.vmem %s0, %s161
      $region28: #{residual_block.5} parent=23 // pred_fallthru
        _
      // Predicated region
      $region29: #{residual_block.5} parent=23 // pred_check
        %p163 = pneg %p56
      $region30: #{residual_block.5} parent=23 // pred_check_branch
        %165 = sbr.rel (%p163) target = $region32
      $region31: #{residual_block.5} parent=23 // pred_region
        %p166 = scmp.lt.s32.totalorder %s10, 1
        %s167 = scalar_select %p166, %s10, 1
        %s168 = smul.addr %s167, 2
        %s169 = smul.addr %s168, 8
        %s170 = scalar_lea.vmem %s1, %s169
      $region32: #{residual_block.5} parent=23 // pred_fallthru
        _
    $region24: #{residual_block.5} parent=5 // pred_fallthru
      _
    %p171 = scmp.le.s32.totalorder 1, %s10
    %p172 = scmp.lt.s32.totalorder %s10, 3
    %p173 = pnand %p171, %p172
    %p174 = pneg %p173
    // Predicated region
    $region33: #{residual_block.5} parent=5 // pred_check
      _
    $region34: #{residual_block.5} parent=5 // pred_check_branch
      %176 = sbr.rel (%p173) target = $region36
    $region35: #{residual_block.5} parent=5 // pred_region
      %s177 = ssub.s32 %s10, 1
      %p178 = scmp.lt.s32.totalorder %s15, 1
      %s179 = scalar_select %p178, %s15, 1
      %s180 = smul.addr %s179, 2
      %s181 = smul.addr %s180, 8
      %s182 = scalar_lea.vmem %s0, %s181
      %p183 = pneg %p36
      %p184 = pneg %p33
      %p185 = scmp.lt.s32.totalorder %s15, 1
      %s186 = scalar_select %p185, %s15, 1
      %s187 = smul.addr %s186, 2
      %s188 = smul.addr %s187, 8
      %s189 = scalar_lea.vmem %s1, %s188
      %p190 = pneg %p62
      %p191 = pneg %p59
      %p192 = pneg %p83
      %p193 = pneg %p80
      %p194 = pneg %p104
      %p195 = pneg %p101
      %p196 = pneg %p130
      %p197 = pneg %p127
      %p198 = scmp.lt.s32.totalorder %s15, 1
      %s199 = scalar_select %p198, %s15, 1
      %s200 = smul.addr %s199, 2
      %s201 = smul.addr %s200, 8
      %s202 = scalar_lea.vmem %s4, %s201
      %p203 = scmp.lt.s32.totalorder %s15, 1
      %s204 = scalar_select %p203, %s15, 1
      %s205 = smul.addr %s204, 2
      %s206 = smul.addr %s205, 8
      %s207 = scalar_lea.vmem %s0, %s206
      %p208 = scmp.lt.s32.totalorder %s15, 1
      %s209 = scalar_select %p208, %s15, 1
      %s210 = smul.addr %s209, 2
      %s211 = smul.addr %s210, 8
      %s212 = scalar_lea.vmem %s1, %s211
      %p213 = scmp.lt.s32.totalorder %s15, 1
      %s214 = scalar_select %p213, %s15, 1
      %s215 = smul.addr %s214, 2
      %s216 = smul.addr %s215, 8
      %s217 = scalar_lea.vmem %s4, %s216
      %v218 = vld [vmem:[%s207] sm:$0xff]
      %v219 = vld [vmem:[%s207 + $0x8] sm:$0xff]
      %v220 = vld [vmem:[%s212] sm:$0xff]
      %v221 = vld [vmem:[%s212 + $0x8] sm:$0xff]
      %v222 = vld [vmem:[%s2] sm:$0xff]
      %224 = vset.pattern.permute.xlu0 0
      %225 = vperm.xlu0 %224, %v222
      %v226 = vpop.permute.xlu0 %225
      %v228 = vmul.f32 %v220, %v226
      %v229 = vmul.f32 %v221, %v226
      %v230 = vadd.f32 %v218, %v228
      %v231 = vadd.f32 %v219, %v229
      %v232 = vld [vmem:[%s3] sm:$0xff]
      %234 = vset.pattern.permute.xlu0 0
      %235 = vperm.xlu0 %234, %v232
      %v236 = vpop.permute.xlu0 %235
      %v238 = vadd.f32 %v230, %v236
      %v239 = vadd.f32 %v231, %v236
      %240 = vst [vmem:[%s217] sm:$0xff] %v238
      %241 = vst [vmem:[%s217 + $0x8] sm:$0xff] %v239
      %p242 = scmp.lt.s32.totalorder %s15, 1
      %s243 = scalar_select %p242, %s15, 1
      %s244 = smul.addr %s243, 2
      %s245 = smul.addr %s244, 8
      %s246 = scalar_lea.vmem %s4, %s245
      // Predicated region
      $region37: #{residual_block.5} parent=35 // pred_check
        %p247 = pneg %p127
      $region38: #{residual_block.5} parent=35 // pred_check_branch
        %249 = sbr.rel (%p247) target = $region40
      $region39: #{residual_block.5} parent=35 // pred_region
        _
      $region40: #{residual_block.5} parent=35 // pred_fallthru
        _
    $region36: #{residual_block.5} parent=5 // pred_fallthru
      _
    %p250 = scmp.le.s32.totalorder 2, %s10
    // Predicated region
    $region41: #{residual_block.5} parent=5 // pred_check
      %p251 = pneg %p250
    $region42: #{residual_block.5} parent=5 // pred_check_branch
      %253 = sbr.rel (%p251) target = $region44
    $region43: #{residual_block.5} parent=5 // pred_region
      %s254 = ssub.s32 %s10, 2
      // Predicated region
      $region45: #{residual_block.5} parent=43 // pred_check
        %p255 = pneg %p133
      $region46: #{residual_block.5} parent=43 // pred_check_branch
        %257 = sbr.rel (%p255) target = $region48
      $region47: #{residual_block.5} parent=43 // pred_region
        %p258 = scmp.lt.s32.totalorder %s16, 1
        %s259 = scalar_select %p258, %s16, 1
        %s260 = smul.addr %s259, 2
        %s261 = smul.addr %s260, 8
        %s262 = scalar_lea.vmem %s4, %s261
      $region48: #{residual_block.5} parent=43 // pred_fallthru
        _
    $region44: #{residual_block.5} parent=5 // pred_fallthru
      _
  $region6: #{residual_block.5} parent=0 // loop_footer
    %s14 = sadd.s32 1, %s10
  $region7: #{residual_block.5} parent=0 // loop_footer_branch
    %9 = sbr.rel target = $region3
  $region8: #{residual_block.5} parent=0 // loop_exit
    _

</llo_original>
